<compile_context>
chip_gen: v7x
topology: tpu7x:2x2x1
jax: 0.10.0
libtpu: 0.0.40
codegen_flags: <defaults>
</compile_context>

<pallas_src>
import functools

import jax
import jax.numpy as jnp
from jax import lax
from jax.experimental import pallas as pl
from jax.experimental.pallas import tpu as pltpu


def _emb_attention_kernel(x_ref, wqkv_ref, wproj_ref, bproj_ref, *rest,
                          num_heads, head_dim, block_b, seq_len, use_mask,
                          compute_dtype):
    C = num_heads * head_dim
    N = seq_len
    M = block_b * N

    if use_mask:
        mask_ref, o_ref = rest
    else:
        (o_ref,) = rest

    x = x_ref[...]                                         # (M, C) compute_dtype

    # ---- fused q/k/v projection: one large-M MXU matmul (scale pre-folded) --
    qkv = jnp.dot(x, wqkv_ref[...], preferred_element_type=jnp.float32)  # (M, 3C)
    qkv = qkv.reshape(block_b, N, 3 * C)                   # lane dim unchanged

    q = qkv[:, :, 0 * C:1 * C].astype(compute_dtype)       # (bb, N, C)
    k = qkv[:, :, 1 * C:2 * C].astype(compute_dtype)
    v = qkv[:, :, 2 * C:3 * C].astype(compute_dtype)

    def _attend(qh, kh, vh, additive_bias):
        # scores[b, c, c'] = sum_n q[b, n, c] * k[b, n, c']   (q^T k, batched)
        scores = lax.dot_general(qh, kh, (((1,), (1,)), ((0,), (0,))),
                                 preferred_element_type=jnp.float32)
        if additive_bias is not None:
            scores = scores + additive_bias
        m = jnp.max(scores, axis=-1, keepdims=True)
        p = jnp.exp(scores - m)
        denom = jnp.sum(p, axis=-1, keepdims=True)
        attn = p * pl.reciprocal(denom, approx=True)
        # out[b, n, c] = sum_c' v[b, n, c'] * attn[b, c, c']  == (attn @ v^T)^T
        return lax.dot_general(vh, attn.astype(compute_dtype),
                               (((2,), (2,)), ((0,), (0,))),
                               preferred_element_type=jnp.float32)

    if use_mask:
        # Additive block-diagonal mask: exp(-1e30 - m) underflows to 0, each
        # row keeps its own head's max -> exactly the per-head softmax.
        out3 = _attend(q, k, v, mask_ref[...])
    else:
        # head_dim % 128 == 0: lane-aligned per-head slices, no H-times
        # redundant MXU FLOPs / EUP exp work.
        outs = []
        for h in range(num_heads):
            sl = slice(h * head_dim, (h + 1) * head_dim)
            outs.append(_attend(q[:, :, sl], k[:, :, sl], v[:, :, sl], None))
        out3 = jnp.concatenate(outs, axis=-1)

    out2 = out3.reshape(M, C).astype(compute_dtype)

    # ---- output projection: one large-M matmul + f32 bias add ---------------
    y = jnp.dot(out2, wproj_ref[...], preferred_element_type=jnp.float32)
    y = y + bproj_ref[...]
    o_ref[...] = y.astype(o_ref.dtype)


def _working_set_bytes(bb, N, C, compute_itemsize, out_itemsize):
    """Rough per-grid-step VMEM working-set estimate (buffers + live values)."""
    M = bb * N
    io = 2 * M * C * compute_itemsize + 2 * M * C * out_itemsize     # x / out (double-buffered)
    weights = (3 * C * C + C * C) * compute_itemsize + C * C * 4 + 8 * C  # Wqkv, Wproj, mask, bias
    interm = 2 * M * 3 * C * 4 + 2 * bb * C * C * 4                  # qkv / out values, scores / probs (f32)
    return io + weights + interm


def _pick_block_b(B, N, C, compute_itemsize, out_itemsize, *,
                  target_rows=512, vmem_ws_cap=24 << 20):
    divisors = [d for d in range(1, B + 1) if B % d == 0]
    qualifying = [bb for bb in divisors
                  if bb * N <= max(target_rows, N)
                  and _working_set_bytes(bb, N, C, compute_itemsize,
                                         out_itemsize) <= vmem_ws_cap
                  and (B < 2 or B // bb >= 2)]        # >= 2 grid steps for 2 TCs
    if not qualifying:
        qualifying = [1]
    even = [bb for bb in qualifying if (B // bb) % 2 == 0]
    return max(even) if even else max(qualifying)


def emb_attention(x, wq, wkv, wproj, bproj, *, num_heads, block_b=None,
                  compute_dtype=jnp.bfloat16):
    """Pallas TPU forward of Emb_Attention.

    x: (B, N, C); wq: (C, C); wkv: (C, 2C); wproj: (C, C); bproj: (C,).
    Weights are input-major (PyTorch linear.weight.T).
    compute_dtype: MXU operand dtype (bf16 by default on v6e/v7x);
                   accumulation and softmax stay in float32.
    """
    B, N, C = x.shape
    assert C % num_heads == 0
    head_dim = C // num_heads
    scale = head_dim ** -0.5
    out_dtype = x.dtype
    if compute_dtype is None:
        compute_dtype = jnp.bfloat16

    compute_itemsize = jnp.dtype(compute_dtype).itemsize
    out_itemsize = jnp.dtype(out_dtype).itemsize
    if block_b is None:
        block_b = _pick_block_b(B, N, C, compute_itemsize, out_itemsize)
    else:
        assert B % block_b == 0
    M = block_b * N
    ws = _working_set_bytes(block_b, N, C, compute_itemsize, out_itemsize)
    # Explicit scoped-VMEM limit: working set + headroom, capped at v7x's
    # 64 MiB per-TC budget (v5e's default scoped limit is only 16 MiB).
    vmem_limit = int(min(max(2 * ws + (2 << 20), 8 << 20), 64 << 20))

    # Masked block-diagonal path unless per-head slices are lane-aligned.
    use_mask = (head_dim % 128) != 0

    # ---- wrapper-side layout plumbing (one-time, outside the kernel) --------
    wqkv = jnp.concatenate([wq * scale, wkv], axis=-1).astype(compute_dtype)  # (C, 3C)
    wproj_c = wproj.astype(compute_dtype)
    bproj2d = bproj.reshape(1, C).astype(jnp.float32)
    x2d = x.reshape(B * N, C).astype(compute_dtype)

    inputs = [x2d, wqkv, wproj_c, bproj2d]
    const_shapes = [(C, 3 * C), (C, C), (1, C)]
    if use_mask:
        head_idx = jnp.arange(C, dtype=jnp.int32) // head_dim
        mask = jnp.where(head_idx[:, None] == head_idx[None, :],
                         0.0, -1e30).astype(jnp.float32)
        inputs.append(mask)
        const_shapes.append((C, C))

    kernel = functools.partial(
        _emb_attention_kernel, num_heads=num_heads, head_dim=head_dim,
        block_b=block_b, seq_len=N, use_mask=use_mask,
        compute_dtype=compute_dtype)

    def build_and_run(single_buffer_consts):
        def const_spec(shape):
            idx = lambda i: (0, 0)
            if single_buffer_consts:
                # Grid-invariant operand: single-buffer it (VMEM hygiene).
                return pl.BlockSpec(shape, idx, pipeline_mode=pl.Buffered(1))
            return pl.BlockSpec(shape, idx)

        in_specs = [pl.BlockSpec((M, C), lambda i: (i, 0))]          # x slab
        in_specs += [const_spec(s) for s in const_shapes]

        return pl.pallas_call(
            kernel,
            out_shape=jax.ShapeDtypeStruct((B * N, C), out_dtype),
            grid_spec=pltpu.PrefetchScalarGridSpec(
                num_scalar_prefetch=0,
                grid=(B // block_b,),
                in_specs=in_specs,
                out_specs=pl.BlockSpec((M, C), lambda i: (i, 0)),
            ),
            compiler_params=pltpu.CompilerParams(
                dimension_semantics=("parallel",),
                vmem_limit_bytes=vmem_limit),
        )(*inputs)

    try:
        out2d = build_and_run(single_buffer_consts=True)
    except Exception:
        # Fallback for jax builds that reject pipeline_mode=pl.Buffered(1) on
        # pallas_call BlockSpecs; semantics are identical (just 2x buffering
        # of the grid-invariant weights).
        out2d = build_and_run(single_buffer_consts=False)

    return out2d.reshape(B, N, C)


def emb_attention_ref(x, wq, wkv, wproj, bproj, *, num_heads):
    """Plain-JAX reference matching the PyTorch forward exactly."""
    B, N, C = x.shape
    d = C // num_heads
    scale = d ** -0.5
    q = x @ wq                                                  # (B, N, C)
    kv = x @ wkv                                                # (B, N, 2C)
    q = q.reshape(B, N, num_heads, d).transpose(0, 2, 1, 3)     # (B, H, N, d)
    kv = kv.reshape(B, N, 2, num_heads, d).transpose(2, 0, 3, 1, 4)
    k, v = kv[0], kv[1]                                         # (B, H, N, d)
    attn = jnp.einsum('bhnd,bhne->bhde', q, k) * scale          # (B, H, d, d)
    attn = jax.nn.softmax(attn, axis=-1)
    out = jnp.einsum('bhde,bhne->bhnd', attn, v)                # (B, H, N, d)
    out = out.transpose(0, 2, 1, 3).reshape(B, N, C)
    return out @ wproj + bproj.reshape(1, 1, C)


if __name__ == "__main__":
    def make_case(key, B, N, C):
        kx, kq, kkv, kp, kb = jax.random.split(key, 5)
        x = jax.random.normal(kx, (B, N, C), dtype=jnp.float32)
        # PyTorch weight (out, in) -> stored input-major (in, out)
        wq = jax.random.normal(kq, (C, C), dtype=jnp.float32) * 0.05
        wkv = jax.random.normal(kkv, (C, 2 * C), dtype=jnp.float32) * 0.05
        wproj = jax.random.normal(kp, (C, C), dtype=jnp.float32) * 0.05
        bproj = jax.random.normal(kb, (C,), dtype=jnp.float32) * 0.05
        return x, wq, wkv, wproj, bproj

    k1, k2 = jax.random.split(jax.random.PRNGKey(0))

    # Case 1: module-default small shapes (head_dim=16 -> masked path).
    B, N, C, H = 2, 8, 32, 2
    x, wq, wkv, wproj, bproj = make_case(k1, B, N, C)
    ref = emb_attention_ref(x, wq, wkv, wproj, bproj, num_heads=H)

    out_f32 = jax.block_until_ready(
        emb_attention(x, wq, wkv, wproj, bproj, num_heads=H,
                      compute_dtype=jnp.float32))
    assert out_f32.shape == (B, N, C)
    assert jnp.allclose(out_f32, ref, atol=2e-2, rtol=2e-2), \
        "f32 masked-path mismatch vs reference"

    out_bf16 = jax.block_until_ready(
        emb_attention(x, wq, wkv, wproj, bproj, num_heads=H))   # default bf16
    assert jnp.allclose(out_bf16, ref, atol=6e-2, rtol=6e-2), \
        "bf16 masked-path mismatch vs reference"

    # Case 2: lane-aligned heads (head_dim=128) -> per-head path (no mask).
    B2, N2, C2, H2 = 2, 8, 256, 2
    x2, wq2, wkv2, wproj2, bproj2 = make_case(k2, B2, N2, C2)
    ref2 = emb_attention_ref(x2, wq2, wkv2, wproj2, bproj2, num_heads=H2)
    out2 = jax.block_until_ready(
        emb_attention(x2, wq2, wkv2, wproj2, bproj2, num_heads=H2,
                      compute_dtype=jnp.float32))
    assert jnp.allclose(out2, ref2, atol=2e-2, rtol=2e-2), \
        "f32 head-wise-path mismatch vs reference"

    print("KERNEL_OK")
</pallas_src>

<mosaic_0001>
module attributes {stable_mosaic.version = 11 : i64} {
  func.func @_emb_attention_kernel(%arg0: i32, %arg1: memref<8x32xf32, #tpu.memory_space<vmem>>, %arg2: memref<32x96xf32, #tpu.memory_space<vmem>>, %arg3: memref<32x32xf32, #tpu.memory_space<vmem>>, %arg4: memref<1x32xf32, #tpu.memory_space<vmem>>, %arg5: memref<32x32xf32, #tpu.memory_space<vmem>>, %arg6: memref<8x32xf32, #tpu.memory_space<vmem>>) attributes {dimension_semantics = [#tpu.dimension_semantics<parallel>], iteration_bounds = array<i64: 2>, scalar_prefetch = 0 : i64, scratch_operands = 0 : i64, tpu.core_type = #tpu.core_type<tc>, window_params = [{transform_indices = @transform_0, window_bounds = array<i64: 8, 32>}, {pipeline_mode = #tpu.pipeline_mode<synchronous>, transform_indices = @transform_1, window_bounds = array<i64: 32, 96>}, {pipeline_mode = #tpu.pipeline_mode<synchronous>, transform_indices = @transform_2, window_bounds = array<i64: 32, 32>}, {pipeline_mode = #tpu.pipeline_mode<synchronous>, transform_indices = @transform_3, window_bounds = array<i64: 1, 32>}, {pipeline_mode = #tpu.pipeline_mode<synchronous>, transform_indices = @transform_4, window_bounds = array<i64: 32, 32>}, {transform_indices = @transform_5, window_bounds = array<i64: 8, 32>}]} {
    %c0 = arith.constant 0 : index
    %c0_0 = arith.constant 0 : index
    %0 = vector.load %arg1[%c0, %c0_0] : memref<8x32xf32, #tpu.memory_space<vmem>>, vector<8x32xf32>
    %c0_1 = arith.constant 0 : index
    %c0_2 = arith.constant 0 : index
    %1 = vector.load %arg2[%c0_1, %c0_2] : memref<32x96xf32, #tpu.memory_space<vmem>>, vector<32x96xf32>
    %cst = arith.constant dense<0.000000e+00> : vector<8x96xf32>
    %2 = tpu.matmul %0, %1, %cst {dimension_numbers = #tpu.dot_dimension_numbers<[1], [0], [0], [1], [0, 0, 1, 1], [], []>} : vector<8x32xf32>, vector<32x96xf32>, vector<8x96xf32> -> vector<8x96xf32>
    %3 = vector.shape_cast %2 : vector<8x96xf32> to vector<1x8x96xf32>
    %4 = vector.extract_strided_slice %3 {offsets = [0, 0, 0], sizes = [1, 8, 32], strides = [1, 1, 1]} : vector<1x8x96xf32> to vector<1x8x32xf32>
    %5 = vector.extract_strided_slice %3 {offsets = [0, 0, 32], sizes = [1, 8, 32], strides = [1, 1, 1]} : vector<1x8x96xf32> to vector<1x8x32xf32>
    %6 = vector.extract_strided_slice %3 {offsets = [0, 0, 64], sizes = [1, 8, 32], strides = [1, 1, 1]} : vector<1x8x96xf32> to vector<1x8x32xf32>
    %c0_3 = arith.constant 0 : index
    %c0_4 = arith.constant 0 : index
    %7 = vector.load %arg5[%c0_3, %c0_4] : memref<32x32xf32, #tpu.memory_space<vmem>>, vector<32x32xf32>
    %cst_5 = arith.constant dense<0.000000e+00> : vector<1x32x32xf32>
    %8 = tpu.matmul %4, %5, %cst_5 {dimension_numbers = #tpu.dot_dimension_numbers<[1], [1], [2], [2], [0, 0, 0, 2, 1, 2], [0], [0]>} : vector<1x8x32xf32>, vector<1x8x32xf32>, vector<1x32x32xf32> -> vector<1x32x32xf32>
    %9 = vector.shape_cast %7 : vector<32x32xf32> to vector<1x32x32xf32>
    %10 = arith.addf %8, %9 : vector<1x32x32xf32>
    %cst_6 = arith.constant dense<0xFF800000> : vector<1x32xf32>
    %11 = vector.multi_reduction <maximumf>, %10, %cst_6 [2] : vector<1x32x32xf32> to vector<1x32xf32>
    %12 = vector.shape_cast %11 : vector<1x32xf32> to vector<1x32x1xf32>
    %13 = vector.broadcast %12 : vector<1x32x1xf32> to vector<1x32x32xf32>
    %14 = arith.subf %10, %13 : vector<1x32x32xf32>
    %15 = math.exp %14 : vector<1x32x32xf32>
    %cst_7 = arith.constant dense<0.000000e+00> : vector<1x32xf32>
    %16 = vector.multi_reduction <add>, %15, %cst_7 [2] : vector<1x32x32xf32> to vector<1x32xf32>
    %17 = vector.shape_cast %16 : vector<1x32xf32> to vector<1x32x1xf32>
    %18 = tpu.reciprocal %17 {approx = true} : vector<1x32x1xf32> -> vector<1x32x1xf32>
    %19 = vector.broadcast %18 : vector<1x32x1xf32> to vector<1x32x32xf32>
    %20 = arith.mulf %15, %19 : vector<1x32x32xf32>
    %cst_8 = arith.constant dense<0.000000e+00> : vector<1x8x32xf32>
    %21 = tpu.matmul %6, %20, %cst_8 {dimension_numbers = #tpu.dot_dimension_numbers<[2], [2], [1], [1], [0, 0, 0, 1, 1, 1], [0], [0]>} : vector<1x8x32xf32>, vector<1x32x32xf32>, vector<1x8x32xf32> -> vector<1x8x32xf32>
    %22 = vector.shape_cast %21 : vector<1x8x32xf32> to vector<8x32xf32>
    %c0_9 = arith.constant 0 : index
    %c0_10 = arith.constant 0 : index
    %23 = vector.load %arg3[%c0_9, %c0_10] : memref<32x32xf32, #tpu.memory_space<vmem>>, vector<32x32xf32>
    %cst_11 = arith.constant dense<0.000000e+00> : vector<8x32xf32>
    %24 = tpu.matmul %22, %23, %cst_11 {dimension_numbers = #tpu.dot_dimension_numbers<[1], [0], [0], [1], [0, 0, 1, 1], [], []>} : vector<8x32xf32>, vector<32x32xf32>, vector<8x32xf32> -> vector<8x32xf32>
    %c0_12 = arith.constant 0 : index
    %c0_13 = arith.constant 0 : index
    %25 = vector.load %arg4[%c0_12, %c0_13] : memref<1x32xf32, #tpu.memory_space<vmem>>, vector<1x32xf32>
    %26 = vector.broadcast %25 : vector<1x32xf32> to vector<8x32xf32>
    %27 = arith.addf %24, %26 : vector<8x32xf32>
    %c0_14 = arith.constant 0 : index
    %c0_15 = arith.constant 0 : index
    %28 = vector.load %arg6[%c0_14, %c0_15] : memref<8x32xf32, #tpu.memory_space<vmem>>, vector<8x32xf32>
    tpu.vector_store %arg6[%c0_14, %c0_15], %27 {strides = array<i32>} : memref<8x32xf32, #tpu.memory_space<vmem>>, vector<8x32xf32>,
    return
  }
  func.func @transform_0(%arg0: i32) -> (i32, i32) {
    %c0_i32 = arith.constant 0 : i32
    %c0_i32_0 = arith.constant 0 : i32
    return %arg0, %c0_i32 : i32, i32
  }
  func.func @transform_1(%arg0: i32) -> (i32, i32) {
    %c0_i32 = arith.constant 0 : i32
    %c0_i32_0 = arith.constant 0 : i32
    %c0_i32_1 = arith.constant 0 : i32
    return %c0_i32, %c0_i32_0 : i32, i32
  }
  func.func @transform_2(%arg0: i32) -> (i32, i32) {
    %c0_i32 = arith.constant 0 : i32
    %c0_i32_0 = arith.constant 0 : i32
    %c0_i32_1 = arith.constant 0 : i32
    return %c0_i32, %c0_i32_0 : i32, i32
  }
  func.func @transform_3(%arg0: i32) -> (i32, i32) {
    %c0_i32 = arith.constant 0 : i32
    %c0_i32_0 = arith.constant 0 : i32
    %c0_i32_1 = arith.constant 0 : i32
    return %c0_i32, %c0_i32_0 : i32, i32
  }
  func.func @transform_4(%arg0: i32) -> (i32, i32) {
    %c0_i32 = arith.constant 0 : i32
    %c0_i32_0 = arith.constant 0 : i32
    %c0_i32_1 = arith.constant 0 : i32
    return %c0_i32, %c0_i32_0 : i32, i32
  }
  func.func @transform_5(%arg0: i32) -> (i32, i32) {
    %c0_i32 = arith.constant 0 : i32
    %c0_i32_0 = arith.constant 0 : i32
    return %arg0, %c0_i32 : i32, i32
  }
}

module attributes {stable_mosaic.version = 11 : i64} {
  func.func @_emb_attention_kernel(%arg0: i32, %arg1: memref<8x32xf32, #tpu.memory_space<vmem>>, %arg2: memref<32x96xf32, #tpu.memory_space<vmem>>, %arg3: memref<32x32xf32, #tpu.memory_space<vmem>>, %arg4: memref<1x32xf32, #tpu.memory_space<vmem>>, %arg5: memref<32x32xf32, #tpu.memory_space<vmem>>, %arg6: memref<8x32xf32, #tpu.memory_space<vmem>>) attributes {dimension_semantics = [#tpu.dimension_semantics<parallel>], iteration_bounds = array<i64: 2>, scalar_prefetch = 0 : i64, scratch_operands = 0 : i64, tpu.core_type = #tpu.core_type<tc>, window_params = [{transform_indices = @transform_0, window_bounds = array<i64: 8, 32>}, {pipeline_mode = #tpu.pipeline_mode<synchronous>, transform_indices = @transform_1, window_bounds = array<i64: 32, 96>}, {pipeline_mode = #tpu.pipeline_mode<synchronous>, transform_indices = @transform_2, window_bounds = array<i64: 32, 32>}, {pipeline_mode = #tpu.pipeline_mode<synchronous>, transform_indices = @transform_3, window_bounds = array<i64: 1, 32>}, {pipeline_mode = #tpu.pipeline_mode<synchronous>, transform_indices = @transform_4, window_bounds = array<i64: 32, 32>}, {transform_indices = @transform_5, window_bounds = array<i64: 8, 32>}]} {
    %c0 = arith.constant 0 : index
    %c0_0 = arith.constant 0 : index
    %0 = vector.load %arg1[%c0, %c0_0] : memref<8x32xf32, #tpu.memory_space<vmem>>, vector<8x32xf32>
    %c0_1 = arith.constant 0 : index
    %c0_2 = arith.constant 0 : index
    %1 = vector.load %arg2[%c0_1, %c0_2] : memref<32x96xf32, #tpu.memory_space<vmem>>, vector<32x96xf32>
    %cst = arith.constant dense<0.000000e+00> : vector<8x96xf32>
    %2 = tpu.matmul %0, %1, %cst {dimension_numbers = #tpu.dot_dimension_numbers<[1], [0], [0], [1], [0, 0, 1, 1], [], []>} : vector<8x32xf32>, vector<32x96xf32>, vector<8x96xf32> -> vector<8x96xf32>
    %3 = vector.shape_cast %2 : vector<8x96xf32> to vector<1x8x96xf32>
    %4 = vector.extract_strided_slice %3 {offsets = [0, 0, 0], sizes = [1, 8, 32], strides = [1, 1, 1]} : vector<1x8x96xf32> to vector<1x8x32xf32>
    %5 = vector.extract_strided_slice %3 {offsets = [0, 0, 32], sizes = [1, 8, 32], strides = [1, 1, 1]} : vector<1x8x96xf32> to vector<1x8x32xf32>
    %6 = vector.extract_strided_slice %3 {offsets = [0, 0, 64], sizes = [1, 8, 32], strides = [1, 1, 1]} : vector<1x8x96xf32> to vector<1x8x32xf32>
    %c0_3 = arith.constant 0 : index
    %c0_4 = arith.constant 0 : index
    %7 = vector.load %arg5[%c0_3, %c0_4] : memref<32x32xf32, #tpu.memory_space<vmem>>, vector<32x32xf32>
    %cst_5 = arith.constant dense<0.000000e+00> : vector<1x32x32xf32>
    %8 = tpu.matmul %4, %5, %cst_5 {dimension_numbers = #tpu.dot_dimension_numbers<[1], [1], [2], [2], [0, 0, 0, 2, 1, 2], [0], [0]>} : vector<1x8x32xf32>, vector<1x8x32xf32>, vector<1x32x32xf32> -> vector<1x32x32xf32>
    %9 = vector.shape_cast %7 : vector<32x32xf32> to vector<1x32x32xf32>
    %10 = arith.addf %8, %9 : vector<1x32x32xf32>
    %cst_6 = arith.constant dense<0xFF800000> : vector<1x32xf32>
    %11 = vector.multi_reduction <maximumf>, %10, %cst_6 [2] : vector<1x32x32xf32> to vector<1x32xf32>
    %12 = vector.shape_cast %11 : vector<1x32xf32> to vector<1x32x1xf32>
    %13 = vector.broadcast %12 : vector<1x32x1xf32> to vector<1x32x32xf32>
    %14 = arith.subf %10, %13 : vector<1x32x32xf32>
    %15 = math.exp %14 : vector<1x32x32xf32>
    %cst_7 = arith.constant dense<0.000000e+00> : vector<1x32xf32>
    %16 = vector.multi_reduction <add>, %15, %cst_7 [2] : vector<1x32x32xf32> to vector<1x32xf32>
    %17 = vector.shape_cast %16 : vector<1x32xf32> to vector<1x32x1xf32>
    %18 = tpu.reciprocal %17 {approx = true} : vector<1x32x1xf32> -> vector<1x32x1xf32>
    %19 = vector.broadcast %18 : vector<1x32x1xf32> to vector<1x32x32xf32>
    %20 = arith.mulf %15, %19 : vector<1x32x32xf32>
    %cst_8 = arith.constant dense<0.000000e+00> : vector<1x8x32xf32>
    %21 = tpu.matmul %6, %20, %cst_8 {dimension_numbers = #tpu.dot_dimension_numbers<[2], [2], [1], [1], [0, 0, 0, 1, 1, 1], [0], [0]>} : vector<1x8x32xf32>, vector<1x32x32xf32>, vector<1x8x32xf32> -> vector<1x8x32xf32>
    %22 = vector.shape_cast %21 : vector<1x8x32xf32> to vector<8x32xf32>
    %c0_9 = arith.constant 0 : index
    %c0_10 = arith.constant 0 : index
    %23 = vector.load %arg3[%c0_9, %c0_10] : memref<32x32xf32, #tpu.memory_space<vmem>>, vector<32x32xf32>
    %cst_11 = arith.constant dense<0.000000e+00> : vector<8x32xf32>
    %24 = tpu.matmul %22, %23, %cst_11 {dimension_numbers = #tpu.dot_dimension_numbers<[1], [0], [0], [1], [0, 0, 1, 1], [], []>} : vector<8x32xf32>, vector<32x32xf32>, vector<8x32xf32> -> vector<8x32xf32>
    %c0_12 = arith.constant 0 : index
    %c0_13 = arith.constant 0 : index
    %25 = vector.load %arg4[%c0_12, %c0_13] : memref<1x32xf32, #tpu.memory_space<vmem>>, vector<1x32xf32>
    %26 = vector.broadcast %25 : vector<1x32xf32> to vector<8x32xf32>
    %27 = arith.addf %24, %26 : vector<8x32xf32>
    %c0_14 = arith.constant 0 : index
    %c0_15 = arith.constant 0 : index
    %28 = vector.load %arg6[%c0_14, %c0_15] : memref<8x32xf32, #tpu.memory_space<vmem>>, vector<8x32xf32>
    tpu.vector_store %arg6[%c0_14, %c0_15], %27 {strides = array<i32>} : memref<8x32xf32, #tpu.memory_space<vmem>>, vector<8x32xf32>,
    return
  }
  func.func @transform_0(%arg0: i32) -> (i32, i32) {
    %c0_i32 = arith.constant 0 : i32
    %c0_i32_0 = arith.constant 0 : i32
    return %arg0, %c0_i32 : i32, i32
  }
  func.func @transform_1(%arg0: i32) -> (i32, i32) {
    %c0_i32 = arith.constant 0 : i32
    %c0_i32_0 = arith.constant 0 : i32
    %c0_i32_1 = arith.constant 0 : i32
    return %c0_i32, %c0_i32_0 : i32, i32
  }
  func.func @transform_2(%arg0: i32) -> (i32, i32) {
    %c0_i32 = arith.constant 0 : i32
    %c0_i32_0 = arith.constant 0 : i32
    %c0_i32_1 = arith.constant 0 : i32
    return %c0_i32, %c0_i32_0 : i32, i32
  }
  func.func @transform_3(%arg0: i32) -> (i32, i32) {
    %c0_i32 = arith.constant 0 : i32
    %c0_i32_0 = arith.constant 0 : i32
    %c0_i32_1 = arith.constant 0 : i32
    return %c0_i32, %c0_i32_0 : i32, i32
  }
  func.func @transform_4(%arg0: i32) -> (i32, i32) {
    %c0_i32 = arith.constant 0 : i32
    %c0_i32_0 = arith.constant 0 : i32
    %c0_i32_1 = arith.constant 0 : i32
    return %c0_i32, %c0_i32_0 : i32, i32
  }
  func.func @transform_5(%arg0: i32) -> (i32, i32) {
    %c0_i32 = arith.constant 0 : i32
    %c0_i32_0 = arith.constant 0 : i32
    return %arg0, %c0_i32 : i32, i32
  }
}

</mosaic_0001>

<llo_original>
// kernel: tpu_custom_call.1
$region0: #{tpu_custom_call.1}
  #allocation0 [shape = 'u32[]', space=smem, size = 0x4, offset = 0x4, fixed_abs, tag = 'smem constant byte address 0x4 - core index']
  #allocation1 [shape = 'u32[144,128]{1,0:T(1,128)}', space=vmem, size = 0x12000, scoped, tag = 'internal scratch']
  %s0 = inlined_call_operand.hbm [shape: f32[16,32], index: 0, kind: input, shape index: {}]
  %s1 = inlined_call_operand.hbm [shape: f32[32,96], index: 1, kind: input, shape index: {}]
  %s2 = inlined_call_operand.hbm [shape: f32[32,32], index: 2, kind: input, shape index: {}]
  %s3 = inlined_call_operand.vmem [shape: f32[1,32], index: 3, kind: input, shape index: {}]
  %s4 = inlined_call_operand.hbm [shape: f32[32,32], index: 4, kind: input, shape index: {}]
  %s5 = inlined_call_operand.hbm [shape: f32[16,32], index: 5, kind: output, shape index: {}]
  %s6 = sld [smem:[#allocation0]]
  $region69: #{tpu_custom_call.1} parent=0
    _
  %s8 = ssub.s32 1, %s6
  %s9 = scalar_select 0, %s8, %s6
  $region1: #{tpu_custom_call.1} parent=0
    #allocation2 [shape = 'u8[8192]{0}', space=vmem, size = 0x2000, scoped, tag = 'input window, operand 0']
    #allocation3 [shape = 's32[2]{0}', space=sflag, size = 0x8, scoped, tag = 'scoped memory for tpu_custom_call.1']
    #allocation4 [shape = 's32[2]{0}', space=sflag, size = 0x8, scoped, tag = 'scoped memory for tpu_custom_call.1']
    #allocation5 [shape = 'u8[16384]{0}', space=vmem, size = 0x4000, scoped, tag = 'input window, operand 1, single buffered']
    #allocation6 [shape = 's32[1]{0}', space=sflag, size = 0x4, scoped, tag = 'scoped memory for tpu_custom_call.1']
    #allocation7 [shape = 'u8[16384]{0}', space=vmem, size = 0x4000, scoped, tag = 'input window, operand 2, single buffered']
    #allocation8 [shape = 'u8[16384]{0}', space=vmem, size = 0x4000, scoped, tag = 'input window, operand 4, single buffered']
    #allocation9 [shape = 's32[1]{0}', space=sflag, size = 0x4, scoped, tag = 'scoped memory for tpu_custom_call.1']
    #allocation10 [shape = 'u8[8192]{0}', space=vmem, size = 0x2000, scoped, tag = 'output window, operand 0']
    %10 = vsyncpa [#allocation3], 0
    %s11 = scalar_lea.sflag [#allocation3], 1
    %12 = vsyncpa %s11, 0
    %13 = vsyncpa [#allocation6], 0
    %14 = vsyncpa [#allocation9], 0
    %15 = vsyncpa [#allocation4], 0
    %s16 = scalar_lea.sflag [#allocation4], 1
    %17 = vsyncpa %s16, 0
    loop: start=0, step=1, limit=4
    $region2: #{tpu_custom_call.1} parent=1 // loop_pre_header
      _
    $region3: #{tpu_custom_call.1} parent=1 // loop_header
      %s19 = sphi 0, %s23
      %p20 = scmp.ge.s32.totalorder %s19, 4
      %s29 = sphi 0, %s31
      %s32 = sphi 0, %s29
      %s33 = sphi 0, %s32
      %s49 = sphi 0, %s33
      %s53 = sphi 0, %s53
      %s55 = sphi 0, %s53
      %s56 = sphi 0, %s55
      %s70 = sphi 0, %s56
      %s74 = sphi 0, %s74
      %s76 = sphi 0, %s74
      %s77 = sphi 0, %s76
      %s91 = sphi 0, %s77
      %s95 = sphi 0, %s95
      %s97 = sphi 0, %s95
      %s98 = sphi 0, %s97
      %s112 = sphi 0, %s98
      %s116 = sphi 0, %s116
      %s118 = sphi 0, %s116
      %s119 = sphi 0, %s118
      %s133 = sphi 0, %s119
      %s139 = sphi 0, %s141
      %s142 = sphi 0, %s139
      %s143 = sphi 0, %s142
      %s159 = sphi 0, %s143
    $region4: #{tpu_custom_call.1} parent=1 // loop_header_branch
      %22 = sbr.rel (%p20) target = $region8
    $region5: #{tpu_custom_call.1} parent=1 // loop_body
      %s24 = ssub.s32 %s19, 1
      %s25 = ssub.s32 %s19, 2
      %s26 = sadd.s32 %s19, 1
      %s27 = ssub.s32 %s19, %s26
      %p28 = scmp.eq.s32.totalorder %s27, 0
      %s30 = sadd.s32 %s29, 1
      %s31 = scalar_select %p28, %s29, %s30
      %p34 = pneg %p28
      %p35 = scmp.eq.s32.totalorder %s19, 1
      %p36 = por %p34, %p35
      %p37 = scmp.ne.s32.totalorder %s29, %s32
      %p38 = scmp.eq.s32.totalorder %s19, 0
      %p39 = por %p37, %p38
      %p40 = scmp.ne.s32.totalorder %s29, %s32
      %p41 = scmp.eq.s32.totalorder %s24, 1
      %p42 = por %p40, %p41
      %p43 = scmp.ne.s32.totalorder %s32, %s33
      %p44 = scmp.eq.s32.totalorder %s24, 0
      %p45 = por %p43, %p44
      %p46 = scmp.ne.s32.totalorder %s32, %s33
      %p47 = scmp.eq.s32.totalorder %s25, 1
      %p48 = por %p46, %p47
      %p50 = scmp.ne.s32.totalorder %s33, %s49
      %p51 = scmp.eq.s32.totalorder %s25, 0
      %p52 = por %p50, %p51
      %s54 = sadd.s32 %s53, 1
      %p57 = scmp.eq.s32.totalorder %s19, 1
      %p58 = scmp.ne.s32.totalorder %s53, %s55
      %p59 = scmp.eq.s32.totalorder %s19, 0
      %p60 = por %p58, %p59
      %p61 = scmp.ne.s32.totalorder %s53, %s55
      %p62 = scmp.eq.s32.totalorder %s24, 1
      %p63 = por %p61, %p62
      %p64 = scmp.ne.s32.totalorder %s55, %s56
      %p65 = scmp.eq.s32.totalorder %s24, 0
      %p66 = por %p64, %p65
      %p67 = scmp.ne.s32.totalorder %s55, %s56
      %p68 = scmp.eq.s32.totalorder %s25, 1
      %p69 = por %p67, %p68
      %p71 = scmp.ne.s32.totalorder %s56, %s70
      %p72 = scmp.eq.s32.totalorder %s25, 0
      %p73 = por %p71, %p72
      %s75 = sadd.s32 %s74, 1
      %p78 = scmp.eq.s32.totalorder %s19, 1
      %p79 = scmp.ne.s32.totalorder %s74, %s76
      %p80 = scmp.eq.s32.totalorder %s19, 0
      %p81 = por %p79, %p80
      %p82 = scmp.ne.s32.totalorder %s74, %s76
      %p83 = scmp.eq.s32.totalorder %s24, 1
      %p84 = por %p82, %p83
      %p85 = scmp.ne.s32.totalorder %s76, %s77
      %p86 = scmp.eq.s32.totalorder %s24, 0
      %p87 = por %p85, %p86
      %p88 = scmp.ne.s32.totalorder %s76, %s77
      %p89 = scmp.eq.s32.totalorder %s25, 1
      %p90 = por %p88, %p89
      %p92 = scmp.ne.s32.totalorder %s77, %s91
      %p93 = scmp.eq.s32.totalorder %s25, 0
      %p94 = por %p92, %p93
      %s96 = sadd.s32 %s95, 1
      %p99 = scmp.eq.s32.totalorder %s19, 1
      %p100 = scmp.ne.s32.totalorder %s95, %s97
      %p101 = scmp.eq.s32.totalorder %s19, 0
      %p102 = por %p100, %p101
      %p103 = scmp.ne.s32.totalorder %s95, %s97
      %p104 = scmp.eq.s32.totalorder %s24, 1
      %p105 = por %p103, %p104
      %p106 = scmp.ne.s32.totalorder %s97, %s98
      %p107 = scmp.eq.s32.totalorder %s24, 0
      %p108 = por %p106, %p107
      %p109 = scmp.ne.s32.totalorder %s97, %s98
      %p110 = scmp.eq.s32.totalorder %s25, 1
      %p111 = por %p109, %p110
      %p113 = scmp.ne.s32.totalorder %s98, %s112
      %p114 = scmp.eq.s32.totalorder %s25, 0
      %p115 = por %p113, %p114
      %s117 = sadd.s32 %s116, 1
      %p120 = scmp.eq.s32.totalorder %s19, 1
      %p121 = scmp.ne.s32.totalorder %s116, %s118
      %p122 = scmp.eq.s32.totalorder %s19, 0
      %p123 = por %p121, %p122
      %p124 = scmp.ne.s32.totalorder %s116, %s118
      %p125 = scmp.eq.s32.totalorder %s24, 1
      %p126 = por %p124, %p125
      %p127 = scmp.ne.s32.totalorder %s118, %s119
      %p128 = scmp.eq.s32.totalorder %s24, 0
      %p129 = por %p127, %p128
      %p130 = scmp.ne.s32.totalorder %s118, %s119
      %p131 = scmp.eq.s32.totalorder %s25, 1
      %p132 = por %p130, %p131
      %p134 = scmp.ne.s32.totalorder %s119, %s133
      %p135 = scmp.eq.s32.totalorder %s25, 0
      %p136 = por %p134, %p135
      %s137 = ssub.s32 %s19, %s26
      %p138 = scmp.eq.s32.totalorder %s137, 0
      %s140 = sadd.s32 %s139, 1
      %s141 = scalar_select %p138, %s139, %s140
      %p144 = pneg %p138
      %p145 = scmp.eq.s32.totalorder %s19, 1
      %p146 = por %p144, %p145
      %p147 = scmp.ne.s32.totalorder %s139, %s142
      %p148 = scmp.eq.s32.totalorder %s19, 0
      %p149 = por %p147, %p148
      %p150 = scmp.ne.s32.totalorder %s139, %s142
      %p151 = scmp.eq.s32.totalorder %s24, 1
      %p152 = por %p150, %p151
      %p153 = scmp.ne.s32.totalorder %s142, %s143
      %p154 = scmp.eq.s32.totalorder %s24, 0
      %p155 = por %p153, %p154
      %p156 = scmp.ne.s32.totalorder %s142, %s143
      %p157 = scmp.eq.s32.totalorder %s25, 1
      %p158 = por %p156, %p157
      %p160 = scmp.ne.s32.totalorder %s143, %s159
      %p161 = scmp.eq.s32.totalorder %s25, 0
      %p162 = por %p160, %p161
      %p163 = scmp.le.s32.totalorder 1, %s19
      %p164 = scmp.lt.s32.totalorder %s19, 3
      %p165 = pnand %p163, %p164
      %p166 = pneg %p165
      // Predicated region
      $region9: #{tpu_custom_call.1} parent=5 // pred_check
        _
      $region10: #{tpu_custom_call.1} parent=5 // pred_check_branch
        %168 = sbr.rel (%p165) target = $region12
      $region11: #{tpu_custom_call.1} parent=5 // pred_region
        %s169 = ssub.s32 %s19, 1
        // Predicated region
        $region13: #{tpu_custom_call.1} parent=11 // pred_check
          %p170 = pneg %p66
        $region14: #{tpu_custom_call.1} parent=11 // pred_check_branch
          %172 = sbr.rel (%p170) target = $region16
        $region15: #{tpu_custom_call.1} parent=11 // pred_region
          %s174 = ssub.s32 512, 512
          %175 = vsyncadd [#allocation6], %s174
          %s176 = sshll.u32 [#allocation5], 4
          %s177 = int_to_ptr.vmem [resolvable:$true] %s176
          %182 = dma.hbm_to_vmem [thread:$0]  %s1, 512, %s177, [#allocation6], 128, 128, 8
        $region16: #{tpu_custom_call.1} parent=11 // pred_fallthru
          _
        // Predicated region
        $region17: #{tpu_custom_call.1} parent=11 // pred_check
          %p183 = pneg %p87
        $region18: #{tpu_custom_call.1} parent=11 // pred_check_branch
          %185 = sbr.rel (%p183) target = $region20
        $region19: #{tpu_custom_call.1} parent=11 // pred_region
          %s187 = ssub.s32 512, 512
          %188 = vsyncadd [#allocation6], %s187
          %s189 = sshll.u32 [#allocation7], 4
          %s190 = int_to_ptr.vmem [resolvable:$true] %s189
          %195 = dma.hbm_to_vmem [thread:$0]  %s2, 512, %s190, [#allocation6], 128, 128, 8
        $region20: #{tpu_custom_call.1} parent=11 // pred_fallthru
          _
        // Predicated region
        $region21: #{tpu_custom_call.1} parent=11 // pred_check
          %p196 = pneg %p108
        $region22: #{tpu_custom_call.1} parent=11 // pred_check_branch
          %198 = sbr.rel (%p196) target = $region24
        $region23: #{tpu_custom_call.1} parent=11 // pred_region
          _
        $region24: #{tpu_custom_call.1} parent=11 // pred_fallthru
          _
        // Predicated region
        $region25: #{tpu_custom_call.1} parent=11 // pred_check
          %p199 = pneg %p129
        $region26: #{tpu_custom_call.1} parent=11 // pred_check_branch
          %201 = sbr.rel (%p199) target = $region28
        $region27: #{tpu_custom_call.1} parent=11 // pred_region
          %s203 = ssub.s32 512, 512
          %204 = vsyncadd [#allocation9], %s203
          %s205 = sshll.u32 [#allocation8], 4
          %s206 = int_to_ptr.vmem [resolvable:$true] %s205
          %211 = dma.hbm_to_vmem [thread:$0]  %s4, 512, %s206, [#allocation9], 128, 128, 8
        $region28: #{tpu_custom_call.1} parent=11 // pred_fallthru
          _
      $region12: #{tpu_custom_call.1} parent=5 // pred_fallthru
        _
      %p212 = scmp.lt.s32.totalorder %s19, 2
      // Predicated region
      $region29: #{tpu_custom_call.1} parent=5 // pred_check
        %p213 = pneg %p212
      $region30: #{tpu_custom_call.1} parent=5 // pred_check_branch
        %215 = sbr.rel (%p213) target = $region32
      $region31: #{tpu_custom_call.1} parent=5 // pred_region
        // Predicated region
        $region33: #{tpu_custom_call.1} parent=31 // pred_check
          %p216 = pneg %p39
        $region34: #{tpu_custom_call.1} parent=31 // pred_check_branch
          %218 = sbr.rel (%p216) target = $region36
        $region35: #{tpu_custom_call.1} parent=31 // pred_region
          %s219 = sand.u32 %s29, 1
          %s220 = scalar_lea.sflag [#allocation3], %s219
          %s221 = sand.u32 %s29, 1
          %s222 = smul.addr %s221, 8
          %s223 = scalar_lea.vmem [#allocation2], %s222
          %s225 = ssub.s32 128, 128
          %226 = vsyncadd %s220, %s225
          %s227 = smul.addr %s19, 128
          %s228 = scalar_lea.hbm %s0, %s227
          %s230 = sshll.u32 %s223, 4
          %s231 = int_to_ptr.vmem [resolvable:$true] %s230
          %233 = dma.hbm_to_vmem [thread:$0]  %s228, 128, %s231, %s220
        $region36: #{tpu_custom_call.1} parent=31 // pred_fallthru
          _
      $region32: #{tpu_custom_call.1} parent=5 // pred_fallthru
        _
      %p234 = scmp.le.s32.totalorder 1, %s19
      %p235 = scmp.lt.s32.totalorder %s19, 3
      %p236 = pnand %p234, %p235
      %p237 = pneg %p236
      // Predicated region
      $region37: #{tpu_custom_call.1} parent=5 // pred_check
        _
      $region38: #{tpu_custom_call.1} parent=5 // pred_check_branch
        %239 = sbr.rel (%p236) target = $region40
      $region39: #{tpu_custom_call.1} parent=5 // pred_region
        %s240 = ssub.s32 %s19, 1
        %s241 = sand.u32 %s32, 1
        %s242 = scalar_lea.sflag [#allocation3], %s241
        %s243 = sand.u32 %s32, 1
        %s244 = smul.addr %s243, 8
        %s245 = scalar_lea.vmem [#allocation2], %s244
        // Predicated region
        $region41: #{tpu_custom_call.1} parent=39 // pred_check
          %p246 = pneg %p45
        $region42: #{tpu_custom_call.1} parent=39 // pred_check_branch
          %248 = sbr.rel (%p246) target = $region44
        $region43: #{tpu_custom_call.1} parent=39 // pred_region
          %249 = dma.done %s242, 128
        $region44: #{tpu_custom_call.1} parent=39 // pred_fallthru
          _
        // Predicated region
        $region45: #{tpu_custom_call.1} parent=39 // pred_check
          %p250 = pneg %p66
        $region46: #{tpu_custom_call.1} parent=39 // pred_check_branch
          %252 = sbr.rel (%p250) target = $region48
        $region47: #{tpu_custom_call.1} parent=39 // pred_region
          %253 = dma.done [#allocation6], 512
        $region48: #{tpu_custom_call.1} parent=39 // pred_fallthru
          _
        // Predicated region
        $region49: #{tpu_custom_call.1} parent=39 // pred_check
          %p254 = pneg %p87
        $region50: #{tpu_custom_call.1} parent=39 // pred_check_branch
          %256 = sbr.rel (%p254) target = $region52
        $region51: #{tpu_custom_call.1} parent=39 // pred_region
          %257 = dma.done [#allocation6], 512
        $region52: #{tpu_custom_call.1} parent=39 // pred_fallthru
          _
        // Predicated region
        $region53: #{tpu_custom_call.1} parent=39 // pred_check
          %p258 = pneg %p129
        $region54: #{tpu_custom_call.1} parent=39 // pred_check_branch
          %260 = sbr.rel (%p258) target = $region56
        $region55: #{tpu_custom_call.1} parent=39 // pred_region
          %261 = dma.done [#allocation9], 512
        $region56: #{tpu_custom_call.1} parent=39 // pred_fallthru
          _
        %s262 = sand.u32 %s32, 1
        %s263 = scalar_lea.sflag [#allocation3], %s262
        %s264 = sand.u32 %s32, 1
        %s265 = smul.addr %s264, 8
        %s266 = scalar_lea.vmem [#allocation2], %s265
        %p267 = pneg %p45
        %p268 = pneg %p42
        %p269 = pneg %p66
        %p270 = pneg %p63
        %p271 = pneg %p87
        %p272 = pneg %p84
        %p273 = pneg %p108
        %p274 = pneg %p105
        %p275 = pneg %p129
        %p276 = pneg %p126
        %p277 = pneg %p155
        %p278 = pneg %p152
        %s279 = sand.u32 %s142, 1
        %s280 = scalar_lea.sflag [#allocation4], %s279
        %s281 = sand.u32 %s142, 1
        %s282 = smul.addr %s281, 8
        %s283 = scalar_lea.vmem [#allocation10], %s282
        %v284 = vld [vmem:[%s245] sm:$0xff]
        %v285 = vld [vmem:[#allocation5] sm:$0xff]
        %v286 = vld [vmem:[#allocation5 + $0x8] sm:$0xff]
        %v287 = vld [vmem:[#allocation5 + $0x10] sm:$0xff]
        %v288 = vld [vmem:[#allocation5 + $0x18] sm:$0xff]
        %vm289 = vcmask 261120
        %v291 = vsel %vm289, %v284, 0
        %293 = vmatprep.subr.mxu0 0.0
        %294 = vmatpush1.msra.mxu0 %v285
        %295 = vmatprep.subr.mxu0 0.0
        %296 = vmatpush1.msra.mxu0 %v286
        %297 = vmatprep.subr.mxu0 0.0
        %298 = vmatpush1.msra.mxu0 %v287
        %299 = vmatprep.subr.mxu0 0.0
        %300 = vmatpush1.msra.mxu0 %v288
        %301 = vmatprep.subr.mxu0 0.0
        %302 = vmatpush1.msra.mxu0 0.0
        %303 = vmatprep.subr.mxu0 0.0
        %304 = vmatpush1.msra.mxu0 0.0
        %305 = vmatprep.subr.mxu0 0.0
        %306 = vmatpush1.msra.mxu0 0.0
        %307 = vmatprep.subr.mxu0 0.0
        %308 = vmatpush1.msra.mxu0 0.0
        %309 = vmatprep.subr.mxu0 0.0
        %310 = vmatpush1.msra.mxu0 0.0
        %311 = vmatprep.subr.mxu0 0.0
        %312 = vmatpush1.msra.mxu0 0.0
        %313 = vmatprep.subr.mxu0 0.0
        %314 = vmatpush1.msra.mxu0 0.0
        %315 = vmatprep.subr.mxu0 0.0
        %316 = vmatpush1.msra.mxu0 0.0
        %317 = vmatprep.subr.mxu0 0.0
        %318 = vmatpush1.msra.mxu0 0.0
        %319 = vmatprep.subr.mxu0 0.0
        %320 = vmatpush1.msra.mxu0 0.0
        %321 = vmatprep.subr.mxu0 0.0
        %322 = vmatpush1.msra.mxu0 0.0
        %323 = vmatprep.subr.mxu0 0.0
        %324 = vmatpush1.msra.mxu0 0.0
        %325 = vmatprep.subr.mxu0 0.0
        %326 = vmatpush1.msra.mxu0 0.0
        %327 = vmatprep.subr.mxu0 0.0
        %328 = vmatpush1.msra.mxu0 0.0
        %329 = vmatprep.subr.mxu0 0.0
        %330 = vmatpush1.msra.mxu0 0.0
        %331 = vmatprep.subr.mxu0 0.0
        %332 = vmatpush1.msra.mxu0 0.0
        %333 = vmatprep.subr.mxu0 0.0
        %334 = vmatpush1.msra.mxu0 0.0
        %335 = vmatprep.subr.mxu0 0.0
        %336 = vmatpush1.msra.mxu0 0.0
        %337 = vmatprep.subr.mxu0 0.0
        %338 = vmatpush1.msra.mxu0 0.0
        %339 = vmatprep.subr.mxu0 0.0
        %340 = vmatpush1.msra.mxu0 0.0
        %341 = vmatprep.subr.mxu0 0.0
        %342 = vmatpush1.msra.mxu0 0.0
        %343 = vmatprep.subr.mxu0 0.0
        %344 = vmatpush1.msra.mxu0 0.0
        %345 = vmatprep.subr.mxu0 0.0
        %346 = vmatpush1.msra.mxu0 0.0
        %347 = vmatprep.subr.mxu0 0.0
        %348 = vmatpush1.msra.mxu0 0.0
        %349 = vmatprep.subr.mxu0 0.0
        %350 = vmatpush1.msra.mxu0 0.0
        %351 = vmatprep.subr.mxu0 0.0
        %352 = vmatpush1.msra.mxu0 0.0
        %353 = vmatprep.subr.mxu0 0.0
        %354 = vmatpush1.msra.mxu0 0.0
        %355 = vmatprep.subr.mxu0 0.0
        %356 = vmatpush1.msra.mxu0 0.0
        %357 = vmatprep.mubr.f32.mxu0 0.0
        %358 = vmatmul.mubr.f32.gmra.mrb[0].mxu0 %v291
        %v359 = vpop.f32.mrb[0].mxu0
        %v360 = vadd.f32 0.0, %v359
        %v361 = vpop.f32.mrb[0].mxu0
        %362 = vdwg.mxu0
        %v363 = vld [vmem:[#allocation8] sm:$0xff]
        %v364 = vld [vmem:[#allocation8 + $0x8] sm:$0xff]
        %v365 = vld [vmem:[#allocation8 + $0x10] sm:$0xff]
        %v366 = vld [vmem:[#allocation8 + $0x18] sm:$0xff]
        %367 = vxpose.xlu0.b32.start [1/16] %v360, 128
        %368 = vxpose.xlu0.b32.cont [2/16] 0.0, 128
        %369 = vxpose.xlu0.b32.cont [3/16] 0.0, 128
        %370 = vxpose.xlu0.b32.cont [4/16] 0.0, 128
        %371 = vxpose.xlu0.b32.cont [5/16] 0.0, 128
        %372 = vxpose.xlu0.b32.cont [6/16] 0.0, 128
        %373 = vxpose.xlu0.b32.cont [7/16] 0.0, 128
        %374 = vxpose.xlu0.b32.cont [8/16] 0.0, 128
        %375 = vxpose.xlu0.b32.cont [9/16] 0.0, 128
        %376 = vxpose.xlu0.b32.cont [10/16] 0.0, 128
        %377 = vxpose.xlu0.b32.cont [11/16] 0.0, 128
        %378 = vxpose.xlu0.b32.cont [12/16] 0.0, 128
        %379 = vxpose.xlu0.b32.cont [13/16] 0.0, 128
        %380 = vxpose.xlu0.b32.cont [14/16] 0.0, 128
        %381 = vxpose.xlu0.b32.cont [15/16] 0.0, 128
        %382 = vxpose.xlu0.b32.end [16/16] 0.0, 128
        %v383 = vpop.trf.xlu0
        %v384 = vpop.trf.xlu0
        %v385 = vpop.trf.xlu0
        %v386 = vpop.trf.xlu0
        %v387 = vpop.trf.xlu0
        %v388 = vpop.trf.xlu0
        %v389 = vpop.trf.xlu0
        %v390 = vpop.trf.xlu0
        %v391 = vpop.trf.xlu0
        %v392 = vpop.trf.xlu0
        %v393 = vpop.trf.xlu0
        %v394 = vpop.trf.xlu0
        %v395 = vpop.trf.xlu0
        %v396 = vpop.trf.xlu0
        %v397 = vpop.trf.xlu0
        %v398 = vpop.trf.xlu0
        %400 = vrot.lane.b32.xlu0 %v360, 96
        %v401 = vpop.permute.xlu0 %400
        %vm403 = vcmask 64512
        %v405 = vsel %vm403, %v383, 0
        %v408 = vsel %vm403, %v384, 0
        %v411 = vsel %vm403, %v385, 0
        %v414 = vsel %vm403, %v386, 0
        %416 = vmatprep.subr.mxu0 0.0
        %417 = vmatpush1.msra.mxu0 %v401
        %418 = vmatprep.subr.mxu0 0.0
        %419 = vmatpush1.msra.mxu0 0.0
        %420 = vmatprep.subr.mxu0 0.0
        %421 = vmatpush1.msra.mxu0 0.0
        %422 = vmatprep.subr.mxu0 0.0
        %423 = vmatpush1.msra.mxu0 0.0
        %424 = vmatprep.subr.mxu0 0.0
        %425 = vmatpush1.msra.mxu0 0.0
        %426 = vmatprep.subr.mxu0 0.0
        %427 = vmatpush1.msra.mxu0 0.0
        %428 = vmatprep.subr.mxu0 0.0
        %429 = vmatpush1.msra.mxu0 0.0
        %430 = vmatprep.subr.mxu0 0.0
        %431 = vmatpush1.msra.mxu0 0.0
        %432 = vmatprep.subr.mxu0 0.0
        %433 = vmatpush1.msra.mxu0 0.0
        %434 = vmatprep.subr.mxu0 0.0
        %435 = vmatpush1.msra.mxu0 0.0
        %436 = vmatprep.subr.mxu0 0.0
        %437 = vmatpush1.msra.mxu0 0.0
        %438 = vmatprep.subr.mxu0 0.0
        %439 = vmatpush1.msra.mxu0 0.0
        %440 = vmatprep.subr.mxu0 0.0
        %441 = vmatpush1.msra.mxu0 0.0
        %442 = vmatprep.subr.mxu0 0.0
        %443 = vmatpush1.msra.mxu0 0.0
        %444 = vmatprep.subr.mxu0 0.0
        %445 = vmatpush1.msra.mxu0 0.0
        %446 = vmatprep.subr.mxu0 0.0
        %447 = vmatpush1.msra.mxu0 0.0
        %448 = vmatprep.subr.mxu0 0.0
        %449 = vmatpush1.msra.mxu0 0.0
        %450 = vmatprep.subr.mxu0 0.0
        %451 = vmatpush1.msra.mxu0 0.0
        %452 = vmatprep.subr.mxu0 0.0
        %453 = vmatpush1.msra.mxu0 0.0
        %454 = vmatprep.subr.mxu0 0.0
        %455 = vmatpush1.msra.mxu0 0.0
        %456 = vmatprep.subr.mxu0 0.0
        %457 = vmatpush1.msra.mxu0 0.0
        %458 = vmatprep.subr.mxu0 0.0
        %459 = vmatpush1.msra.mxu0 0.0
        %460 = vmatprep.subr.mxu0 0.0
        %461 = vmatpush1.msra.mxu0 0.0
        %462 = vmatprep.subr.mxu0 0.0
        %463 = vmatpush1.msra.mxu0 0.0
        %464 = vmatprep.subr.mxu0 0.0
        %465 = vmatpush1.msra.mxu0 0.0
        %466 = vmatprep.subr.mxu0 0.0
        %467 = vmatpush1.msra.mxu0 0.0
        %468 = vmatprep.subr.mxu0 0.0
        %469 = vmatpush1.msra.mxu0 0.0
        %470 = vmatprep.subr.mxu0 0.0
        %471 = vmatpush1.msra.mxu0 0.0
        %472 = vmatprep.subr.mxu0 0.0
        %473 = vmatpush1.msra.mxu0 0.0
        %474 = vmatprep.subr.mxu0 0.0
        %475 = vmatpush1.msra.mxu0 0.0
        %476 = vmatprep.subr.mxu0 0.0
        %477 = vmatpush1.msra.mxu0 0.0
        %478 = vmatprep.subr.mxu0 0.0
        %479 = vmatpush1.msra.mxu0 0.0
        %480 = vmatprep.mubr.f32.mxu0 0.0
        %481 = vmatmul.mubr.f32.gmra.mrb[0].mxu0 %v405
        %v482 = vpop.f32.mrb[0].mxu0
        %v483 = vadd.f32 %v363, %v482
        %v484 = vpop.f32.mrb[0].mxu0
        %485 = vmatprep.mubr.f32.mxu0 0.0
        %486 = vmatmul.mubr.f32.gmra.mrb[0].mxu0 %v408
        %v487 = vpop.f32.mrb[0].mxu0
        %v488 = vadd.f32 %v364, %v487
        %v489 = vpop.f32.mrb[0].mxu0
        %490 = vmatprep.mubr.f32.mxu0 0.0
        %491 = vmatmul.mubr.f32.gmra.mrb[0].mxu0 %v411
        %v492 = vpop.f32.mrb[0].mxu0
        %v493 = vadd.f32 %v365, %v492
        %v494 = vpop.f32.mrb[0].mxu0
        %495 = vmatprep.mubr.f32.mxu0 0.0
        %496 = vmatmul.mubr.f32.gmra.mrb[0].mxu0 %v414
        %v497 = vpop.f32.mrb[0].mxu0
        %v498 = vadd.f32 %v366, %v497
        %v499 = vpop.f32.mrb[0].mxu0
        %500 = vdwg.mxu0
        %v501 = vsel %vm289, %v483, -inf
        %502 = vmax.xlane.f32.xlu0 %v501
        %v503 = vpop.xlane.xlu0 %502
        %v504 = vsel %vm289, %v488, -inf
        %505 = vmax.xlane.f32.xlu0 %v504
        %v506 = vpop.xlane.xlu0 %505
        %v507 = vsel %vm289, %v493, -inf
        %508 = vmax.xlane.f32.xlu0 %v507
        %v509 = vpop.xlane.xlu0 %508
        %v510 = vsel %vm289, %v498, -inf
        %511 = vmax.xlane.f32.xlu0 %v510
        %v512 = vpop.xlane.xlu0 %511
        %v513 = vsub.f32 %v483, %v503
        %v514 = vsub.f32 %v488, %v506
        %v515 = vsub.f32 %v493, %v509
        %v516 = vsub.f32 %v498, %v512
        %v517 = vmul.f32 %v513, 1.442695
        %v518 = vpow.pop %v517
        %v519 = vmul.f32 %v514, 1.442695
        %v520 = vpow.pop %v519
        %v521 = vmul.f32 %v515, 1.442695
        %v522 = vpow.pop %v521
        %v523 = vmul.f32 %v516, 1.442695
        %v524 = vpow.pop %v523
        %v525 = vsel %vm289, %v518, 0.0
        %526 = vadd.xlane.f32.xlu0 %v525
        %v527 = vpop.xlane.xlu0 %526
        %v528 = vsel %vm289, %v520, 0.0
        %529 = vadd.xlane.f32.xlu0 %v528
        %v530 = vpop.xlane.xlu0 %529
        %v531 = vsel %vm289, %v522, 0.0
        %532 = vadd.xlane.f32.xlu0 %v531
        %v533 = vpop.xlane.xlu0 %532
        %v534 = vsel %vm289, %v524, 0.0
        %535 = vadd.xlane.f32.xlu0 %v534
        %v536 = vpop.xlane.xlu0 %535
        %v537 = vrcp.pop %v527
        %v538 = vrcp.pop %v530
        %v539 = vrcp.pop %v533
        %v540 = vrcp.pop %v536
        %v541 = vmul.f32 %v518, %v537
        %v542 = vmul.f32 %v520, %v538
        %v543 = vmul.f32 %v522, %v539
        %v544 = vmul.f32 %v524, %v540
        %545 = vrot.lane.b32.xlu0 %v360, 64
        %v546 = vpop.permute.xlu0 %545
        %v547 = vsel %vm289, %v546, 0
        %v550 = vsel %vm289, %v541, 0
        %v553 = vsel %vm289, %v542, 0
        %v556 = vsel %vm289, %v543, 0
        %v559 = vsel %vm289, %v544, 0
        %561 = vmatprep.subr.mxu0 0.0
        %562 = vmatpush1.xpose.msra.mxu0 %v550
        %563 = vmatprep.subr.mxu0 0.0
        %564 = vmatpush1.xpose.msra.mxu0 %v553
        %565 = vmatprep.subr.mxu0 0.0
        %566 = vmatpush1.xpose.msra.mxu0 %v556
        %567 = vmatprep.subr.mxu0 0.0
        %568 = vmatpush1.xpose.msra.mxu0 %v559
        %569 = vmatprep.subr.mxu0 0.0
        %570 = vmatpush1.xpose.msra.mxu0 0.0
        %571 = vmatprep.subr.mxu0 0.0
        %572 = vmatpush1.xpose.msra.mxu0 0.0
        %573 = vmatprep.subr.mxu0 0.0
        %574 = vmatpush1.xpose.msra.mxu0 0.0
        %575 = vmatprep.subr.mxu0 0.0
        %576 = vmatpush1.xpose.msra.mxu0 0.0
        %577 = vmatprep.subr.mxu0 0.0
        %578 = vmatpush1.xpose.msra.mxu0 0.0
        %579 = vmatprep.subr.mxu0 0.0
        %580 = vmatpush1.xpose.msra.mxu0 0.0
        %581 = vmatprep.subr.mxu0 0.0
        %582 = vmatpush1.xpose.msra.mxu0 0.0
        %583 = vmatprep.subr.mxu0 0.0
        %584 = vmatpush1.xpose.msra.mxu0 0.0
        %585 = vmatprep.subr.mxu0 0.0
        %586 = vmatpush1.xpose.msra.mxu0 0.0
        %587 = vmatprep.subr.mxu0 0.0
        %588 = vmatpush1.xpose.msra.mxu0 0.0
        %589 = vmatprep.subr.mxu0 0.0
        %590 = vmatpush1.xpose.msra.mxu0 0.0
        %591 = vmatprep.subr.mxu0 0.0
        %592 = vmatpush1.xpose.msra.mxu0 0.0
        %593 = vmatprep.subr.mxu0 0.0
        %594 = vmatpush1.xpose.msra.mxu0 0.0
        %595 = vmatprep.subr.mxu0 0.0
        %596 = vmatpush1.xpose.msra.mxu0 0.0
        %597 = vmatprep.subr.mxu0 0.0
        %598 = vmatpush1.xpose.msra.mxu0 0.0
        %599 = vmatprep.subr.mxu0 0.0
        %600 = vmatpush1.xpose.msra.mxu0 0.0
        %601 = vmatprep.subr.mxu0 0.0
        %602 = vmatpush1.xpose.msra.mxu0 0.0
        %603 = vmatprep.subr.mxu0 0.0
        %604 = vmatpush1.xpose.msra.mxu0 0.0
        %605 = vmatprep.subr.mxu0 0.0
        %606 = vmatpush1.xpose.msra.mxu0 0.0
        %607 = vmatprep.subr.mxu0 0.0
        %608 = vmatpush1.xpose.msra.mxu0 0.0
        %609 = vmatprep.subr.mxu0 0.0
        %610 = vmatpush1.xpose.msra.mxu0 0.0
        %611 = vmatprep.subr.mxu0 0.0
        %612 = vmatpush1.xpose.msra.mxu0 0.0
        %613 = vmatprep.subr.mxu0 0.0
        %614 = vmatpush1.xpose.msra.mxu0 0.0
        %615 = vmatprep.subr.mxu0 0.0
        %616 = vmatpush1.xpose.msra.mxu0 0.0
        %617 = vmatprep.subr.mxu0 0.0
        %618 = vmatpush1.xpose.msra.mxu0 0.0
        %619 = vmatprep.subr.mxu0 0.0
        %620 = vmatpush1.xpose.msra.mxu0 0.0
        %621 = vmatprep.subr.mxu0 0.0
        %622 = vmatpush1.xpose.msra.mxu0 0.0
        %623 = vmatprep.subr.mxu0 0.0
        %624 = vmatpush1.xpose.msra.mxu0 0.0
        %625 = vmatprep.mubr.f32.mxu0 0.0
        %626 = vmatmul.mubr.f32.gmra.mrb[0].mxu0 %v547
        %v627 = vpop.f32.mrb[0].mxu0
        %v628 = vadd.f32 0.0, %v627
        %v629 = vpop.f32.mrb[0].mxu0
        %630 = vdwg.mxu0
        %v631 = vld [vmem:[#allocation7] sm:$0xff]
        %v632 = vld [vmem:[#allocation7 + $0x8] sm:$0xff]
        %v633 = vld [vmem:[#allocation7 + $0x10] sm:$0xff]
        %v634 = vld [vmem:[#allocation7 + $0x18] sm:$0xff]
        %v635 = vld [vmem:[%s3] sm:$0x1]
        %v637 = vlaneseq
        %v638 = vshrl.u32 %v637, 7
        %v639 = vsub.s32 0, %v638
        %v640 = vrot.slane %v635, %v639
        %v643 = vsel %vm289, %v628, 0
        %645 = vmatprep.subr.mxu0 0.0
        %646 = vmatpush1.msra.mxu0 %v631
        %647 = vmatprep.subr.mxu0 0.0
        %648 = vmatpush1.msra.mxu0 %v632
        %649 = vmatprep.subr.mxu0 0.0
        %650 = vmatpush1.msra.mxu0 %v633
        %651 = vmatprep.subr.mxu0 0.0
        %652 = vmatpush1.msra.mxu0 %v634
        %653 = vmatprep.subr.mxu0 0.0
        %654 = vmatpush1.msra.mxu0 0.0
        %655 = vmatprep.subr.mxu0 0.0
        %656 = vmatpush1.msra.mxu0 0.0
        %657 = vmatprep.subr.mxu0 0.0
        %658 = vmatpush1.msra.mxu0 0.0
        %659 = vmatprep.subr.mxu0 0.0
        %660 = vmatpush1.msra.mxu0 0.0
        %661 = vmatprep.subr.mxu0 0.0
        %662 = vmatpush1.msra.mxu0 0.0
        %663 = vmatprep.subr.mxu0 0.0
        %664 = vmatpush1.msra.mxu0 0.0
        %665 = vmatprep.subr.mxu0 0.0
        %666 = vmatpush1.msra.mxu0 0.0
        %667 = vmatprep.subr.mxu0 0.0
        %668 = vmatpush1.msra.mxu0 0.0
        %669 = vmatprep.subr.mxu0 0.0
        %670 = vmatpush1.msra.mxu0 0.0
        %671 = vmatprep.subr.mxu0 0.0
        %672 = vmatpush1.msra.mxu0 0.0
        %673 = vmatprep.subr.mxu0 0.0
        %674 = vmatpush1.msra.mxu0 0.0
        %675 = vmatprep.subr.mxu0 0.0
        %676 = vmatpush1.msra.mxu0 0.0
        %677 = vmatprep.subr.mxu0 0.0
        %678 = vmatpush1.msra.mxu0 0.0
        %679 = vmatprep.subr.mxu0 0.0
        %680 = vmatpush1.msra.mxu0 0.0
        %681 = vmatprep.subr.mxu0 0.0
        %682 = vmatpush1.msra.mxu0 0.0
        %683 = vmatprep.subr.mxu0 0.0
        %684 = vmatpush1.msra.mxu0 0.0
        %685 = vmatprep.subr.mxu0 0.0
        %686 = vmatpush1.msra.mxu0 0.0
        %687 = vmatprep.subr.mxu0 0.0
        %688 = vmatpush1.msra.mxu0 0.0
        %689 = vmatprep.subr.mxu0 0.0
        %690 = vmatpush1.msra.mxu0 0.0
        %691 = vmatprep.subr.mxu0 0.0
        %692 = vmatpush1.msra.mxu0 0.0
        %693 = vmatprep.subr.mxu0 0.0
        %694 = vmatpush1.msra.mxu0 0.0
        %695 = vmatprep.subr.mxu0 0.0
        %696 = vmatpush1.msra.mxu0 0.0
        %697 = vmatprep.subr.mxu0 0.0
        %698 = vmatpush1.msra.mxu0 0.0
        %699 = vmatprep.subr.mxu0 0.0
        %700 = vmatpush1.msra.mxu0 0.0
        %701 = vmatprep.subr.mxu0 0.0
        %702 = vmatpush1.msra.mxu0 0.0
        %703 = vmatprep.subr.mxu0 0.0
        %704 = vmatpush1.msra.mxu0 0.0
        %705 = vmatprep.subr.mxu0 0.0
        %706 = vmatpush1.msra.mxu0 0.0
        %707 = vmatprep.subr.mxu0 0.0
        %708 = vmatpush1.msra.mxu0 0.0
        %709 = vmatprep.mubr.f32.mxu0 0.0
        %710 = vmatmul.mubr.f32.gmra.mrb[0].mxu0 %v643
        %v711 = vpop.f32.mrb[0].mxu0
        %v712 = vadd.f32 %v640, %v711
        %v713 = vpop.f32.mrb[0].mxu0
        %714 = vdwg.mxu0
        %715 = vst.msk [vmem:[%s283] sm:$0xff] %vm289, %v712
        %s716 = sand.u32 %s142, 1
        %s717 = scalar_lea.sflag [#allocation4], %s716
        %s718 = sand.u32 %s142, 1
        %s719 = smul.addr %s718, 8
        %s720 = scalar_lea.vmem [#allocation10], %s719
        // Predicated region
        $region57: #{tpu_custom_call.1} parent=39 // pred_check
          %p721 = pneg %p152
        $region58: #{tpu_custom_call.1} parent=39 // pred_check_branch
          %723 = sbr.rel (%p721) target = $region60
        $region59: #{tpu_custom_call.1} parent=39 // pred_region
          %s725 = ssub.s32 128, 128
          %726 = vsyncadd %s717, %s725
          %s727 = smul.addr %s24, 128
          %s728 = scalar_lea.hbm %s5, %s727
          %s730 = sshll.u32 %s720, 4
          %s731 = int_to_ptr.vmem [resolvable:$true] %s730
          %733 = dma.vmem_to_hbm [thread:$0]  %s731, 128, %s728, %s717
        $region60: #{tpu_custom_call.1} parent=39 // pred_fallthru
          _
      $region40: #{tpu_custom_call.1} parent=5 // pred_fallthru
        _
      %p734 = scmp.le.s32.totalorder 2, %s19
      // Predicated region
      $region61: #{tpu_custom_call.1} parent=5 // pred_check
        %p735 = pneg %p734
      $region62: #{tpu_custom_call.1} parent=5 // pred_check_branch
        %737 = sbr.rel (%p735) target = $region64
      $region63: #{tpu_custom_call.1} parent=5 // pred_region
        %s738 = ssub.s32 %s19, 2
        // Predicated region
        $region65: #{tpu_custom_call.1} parent=63 // pred_check
          %p739 = pneg %p158
        $region66: #{tpu_custom_call.1} parent=63 // pred_check_branch
          %741 = sbr.rel (%p739) target = $region68
        $region67: #{tpu_custom_call.1} parent=63 // pred_region
          %s742 = sand.u32 %s143, 1
          %s743 = scalar_lea.sflag [#allocation4], %s742
          %s744 = sand.u32 %s143, 1
          %s745 = smul.addr %s744, 8
          %s746 = scalar_lea.vmem [#allocation10], %s745
          %747 = dma.done %s743, 128
        $region68: #{tpu_custom_call.1} parent=63 // pred_fallthru
          _
      $region64: #{tpu_custom_call.1} parent=5 // pred_fallthru
        _
    $region6: #{tpu_custom_call.1} parent=1 // loop_footer
      %s23 = sadd.s32 1, %s19
    $region7: #{tpu_custom_call.1} parent=1 // loop_footer_branch
      %18 = sbr.rel target = $region3
    $region8: #{tpu_custom_call.1} parent=1 // loop_exit
      _
    %748 = vsyncpa [#allocation3], 1
    %s749 = scalar_lea.sflag [#allocation3], 1
    %750 = vsyncpa %s749, 1
    %751 = vsyncpa [#allocation6], 1
    %752 = vsyncpa [#allocation9], 1
    %753 = vsyncpa [#allocation4], 1
    %s754 = scalar_lea.sflag [#allocation4], 1
    %755 = vsyncpa %s754, 1

// kernel: tpu_custom_call.1
$region0: #{tpu_custom_call.1}
  #allocation0 [shape = 'u32[]', space=smem, size = 0x4, offset = 0x4, fixed_abs, tag = 'smem constant byte address 0x4 - core index']
  #allocation1 [shape = 'u32[144,128]{1,0:T(1,128)}', space=vmem, size = 0x12000, scoped, tag = 'internal scratch']
  %s0 = inlined_call_operand.hbm [shape: f32[16,32], index: 0, kind: input, shape index: {}]
  %s1 = inlined_call_operand.hbm [shape: f32[32,96], index: 1, kind: input, shape index: {}]
  %s2 = inlined_call_operand.hbm [shape: f32[32,32], index: 2, kind: input, shape index: {}]
  %s3 = inlined_call_operand.vmem [shape: f32[1,32], index: 3, kind: input, shape index: {}]
  %s4 = inlined_call_operand.hbm [shape: f32[32,32], index: 4, kind: input, shape index: {}]
  %s5 = inlined_call_operand.hbm [shape: f32[16,32], index: 5, kind: output, shape index: {}]
  %s6 = sld [smem:[#allocation0]]
  $region69: #{tpu_custom_call.1} parent=0
    _
  %s8 = ssub.s32 1, %s6
  %s9 = scalar_select 0, %s8, %s6
  $region1: #{tpu_custom_call.1} parent=0
    #allocation2 [shape = 'u8[8192]{0}', space=vmem, size = 0x2000, scoped, tag = 'input window, operand 0']
    #allocation3 [shape = 's32[2]{0}', space=sflag, size = 0x8, scoped, tag = 'scoped memory for tpu_custom_call.1']
    #allocation4 [shape = 's32[2]{0}', space=sflag, size = 0x8, scoped, tag = 'scoped memory for tpu_custom_call.1']
    #allocation5 [shape = 'u8[16384]{0}', space=vmem, size = 0x4000, scoped, tag = 'input window, operand 1, single buffered']
    #allocation6 [shape = 's32[1]{0}', space=sflag, size = 0x4, scoped, tag = 'scoped memory for tpu_custom_call.1']
    #allocation7 [shape = 'u8[16384]{0}', space=vmem, size = 0x4000, scoped, tag = 'input window, operand 2, single buffered']
    #allocation8 [shape = 'u8[16384]{0}', space=vmem, size = 0x4000, scoped, tag = 'input window, operand 4, single buffered']
    #allocation9 [shape = 's32[1]{0}', space=sflag, size = 0x4, scoped, tag = 'scoped memory for tpu_custom_call.1']
    #allocation10 [shape = 'u8[8192]{0}', space=vmem, size = 0x2000, scoped, tag = 'output window, operand 0']
    %10 = vsyncpa [#allocation3], 0
    %s11 = scalar_lea.sflag [#allocation3], 1
    %12 = vsyncpa %s11, 0
    %13 = vsyncpa [#allocation6], 0
    %14 = vsyncpa [#allocation9], 0
    %15 = vsyncpa [#allocation4], 0
    %s16 = scalar_lea.sflag [#allocation4], 1
    %17 = vsyncpa %s16, 0
    loop: start=0, step=1, limit=4
    $region2: #{tpu_custom_call.1} parent=1 // loop_pre_header
      _
    $region3: #{tpu_custom_call.1} parent=1 // loop_header
      %s19 = sphi 0, %s23
      %p20 = scmp.ge.s32.totalorder %s19, 4
      %s29 = sphi 0, %s31
      %s32 = sphi 0, %s29
      %s33 = sphi 0, %s32
      %s49 = sphi 0, %s33
      %s53 = sphi 0, %s53
      %s55 = sphi 0, %s53
      %s56 = sphi 0, %s55
      %s70 = sphi 0, %s56
      %s74 = sphi 0, %s74
      %s76 = sphi 0, %s74
      %s77 = sphi 0, %s76
      %s91 = sphi 0, %s77
      %s95 = sphi 0, %s95
      %s97 = sphi 0, %s95
      %s98 = sphi 0, %s97
      %s112 = sphi 0, %s98
      %s116 = sphi 0, %s116
      %s118 = sphi 0, %s116
      %s119 = sphi 0, %s118
      %s133 = sphi 0, %s119
      %s139 = sphi 0, %s141
      %s142 = sphi 0, %s139
      %s143 = sphi 0, %s142
      %s159 = sphi 0, %s143
    $region4: #{tpu_custom_call.1} parent=1 // loop_header_branch
      %22 = sbr.rel (%p20) target = $region8
    $region5: #{tpu_custom_call.1} parent=1 // loop_body
      %s24 = ssub.s32 %s19, 1
      %s25 = ssub.s32 %s19, 2
      %s26 = sadd.s32 %s19, 1
      %s27 = ssub.s32 %s19, %s26
      %p28 = scmp.eq.s32.totalorder %s27, 0
      %s30 = sadd.s32 %s29, 1
      %s31 = scalar_select %p28, %s29, %s30
      %p34 = pneg %p28
      %p35 = scmp.eq.s32.totalorder %s19, 1
      %p36 = por %p34, %p35
      %p37 = scmp.ne.s32.totalorder %s29, %s32
      %p38 = scmp.eq.s32.totalorder %s19, 0
      %p39 = por %p37, %p38
      %p40 = scmp.ne.s32.totalorder %s29, %s32
      %p41 = scmp.eq.s32.totalorder %s24, 1
      %p42 = por %p40, %p41
      %p43 = scmp.ne.s32.totalorder %s32, %s33
      %p44 = scmp.eq.s32.totalorder %s24, 0
      %p45 = por %p43, %p44
      %p46 = scmp.ne.s32.totalorder %s32, %s33
      %p47 = scmp.eq.s32.totalorder %s25, 1
      %p48 = por %p46, %p47
      %p50 = scmp.ne.s32.totalorder %s33, %s49
      %p51 = scmp.eq.s32.totalorder %s25, 0
      %p52 = por %p50, %p51
      %s54 = sadd.s32 %s53, 1
      %p57 = scmp.eq.s32.totalorder %s19, 1
      %p58 = scmp.ne.s32.totalorder %s53, %s55
      %p59 = scmp.eq.s32.totalorder %s19, 0
      %p60 = por %p58, %p59
      %p61 = scmp.ne.s32.totalorder %s53, %s55
      %p62 = scmp.eq.s32.totalorder %s24, 1
      %p63 = por %p61, %p62
      %p64 = scmp.ne.s32.totalorder %s55, %s56
      %p65 = scmp.eq.s32.totalorder %s24, 0
      %p66 = por %p64, %p65
      %p67 = scmp.ne.s32.totalorder %s55, %s56
      %p68 = scmp.eq.s32.totalorder %s25, 1
      %p69 = por %p67, %p68
      %p71 = scmp.ne.s32.totalorder %s56, %s70
      %p72 = scmp.eq.s32.totalorder %s25, 0
      %p73 = por %p71, %p72
      %s75 = sadd.s32 %s74, 1
      %p78 = scmp.eq.s32.totalorder %s19, 1
      %p79 = scmp.ne.s32.totalorder %s74, %s76
      %p80 = scmp.eq.s32.totalorder %s19, 0
      %p81 = por %p79, %p80
      %p82 = scmp.ne.s32.totalorder %s74, %s76
      %p83 = scmp.eq.s32.totalorder %s24, 1
      %p84 = por %p82, %p83
      %p85 = scmp.ne.s32.totalorder %s76, %s77
      %p86 = scmp.eq.s32.totalorder %s24, 0
      %p87 = por %p85, %p86
      %p88 = scmp.ne.s32.totalorder %s76, %s77
      %p89 = scmp.eq.s32.totalorder %s25, 1
      %p90 = por %p88, %p89
      %p92 = scmp.ne.s32.totalorder %s77, %s91
      %p93 = scmp.eq.s32.totalorder %s25, 0
      %p94 = por %p92, %p93
      %s96 = sadd.s32 %s95, 1
      %p99 = scmp.eq.s32.totalorder %s19, 1
      %p100 = scmp.ne.s32.totalorder %s95, %s97
      %p101 = scmp.eq.s32.totalorder %s19, 0
      %p102 = por %p100, %p101
      %p103 = scmp.ne.s32.totalorder %s95, %s97
      %p104 = scmp.eq.s32.totalorder %s24, 1
      %p105 = por %p103, %p104
      %p106 = scmp.ne.s32.totalorder %s97, %s98
      %p107 = scmp.eq.s32.totalorder %s24, 0
      %p108 = por %p106, %p107
      %p109 = scmp.ne.s32.totalorder %s97, %s98
      %p110 = scmp.eq.s32.totalorder %s25, 1
      %p111 = por %p109, %p110
      %p113 = scmp.ne.s32.totalorder %s98, %s112
      %p114 = scmp.eq.s32.totalorder %s25, 0
      %p115 = por %p113, %p114
      %s117 = sadd.s32 %s116, 1
      %p120 = scmp.eq.s32.totalorder %s19, 1
      %p121 = scmp.ne.s32.totalorder %s116, %s118
      %p122 = scmp.eq.s32.totalorder %s19, 0
      %p123 = por %p121, %p122
      %p124 = scmp.ne.s32.totalorder %s116, %s118
      %p125 = scmp.eq.s32.totalorder %s24, 1
      %p126 = por %p124, %p125
      %p127 = scmp.ne.s32.totalorder %s118, %s119
      %p128 = scmp.eq.s32.totalorder %s24, 0
      %p129 = por %p127, %p128
      %p130 = scmp.ne.s32.totalorder %s118, %s119
      %p131 = scmp.eq.s32.totalorder %s25, 1
      %p132 = por %p130, %p131
      %p134 = scmp.ne.s32.totalorder %s119, %s133
      %p135 = scmp.eq.s32.totalorder %s25, 0
      %p136 = por %p134, %p135
      %s137 = ssub.s32 %s19, %s26
      %p138 = scmp.eq.s32.totalorder %s137, 0
      %s140 = sadd.s32 %s139, 1
      %s141 = scalar_select %p138, %s139, %s140
      %p144 = pneg %p138
      %p145 = scmp.eq.s32.totalorder %s19, 1
      %p146 = por %p144, %p145
      %p147 = scmp.ne.s32.totalorder %s139, %s142
      %p148 = scmp.eq.s32.totalorder %s19, 0
      %p149 = por %p147, %p148
      %p150 = scmp.ne.s32.totalorder %s139, %s142
      %p151 = scmp.eq.s32.totalorder %s24, 1
      %p152 = por %p150, %p151
      %p153 = scmp.ne.s32.totalorder %s142, %s143
      %p154 = scmp.eq.s32.totalorder %s24, 0
      %p155 = por %p153, %p154
      %p156 = scmp.ne.s32.totalorder %s142, %s143
      %p157 = scmp.eq.s32.totalorder %s25, 1
      %p158 = por %p156, %p157
      %p160 = scmp.ne.s32.totalorder %s143, %s159
      %p161 = scmp.eq.s32.totalorder %s25, 0
      %p162 = por %p160, %p161
      %p163 = scmp.le.s32.totalorder 1, %s19
      %p164 = scmp.lt.s32.totalorder %s19, 3
      %p165 = pnand %p163, %p164
      %p166 = pneg %p165
      // Predicated region
      $region9: #{tpu_custom_call.1} parent=5 // pred_check
        _
      $region10: #{tpu_custom_call.1} parent=5 // pred_check_branch
        %168 = sbr.rel (%p165) target = $region12
      $region11: #{tpu_custom_call.1} parent=5 // pred_region
        %s169 = ssub.s32 %s19, 1
        // Predicated region
        $region13: #{tpu_custom_call.1} parent=11 // pred_check
          %p170 = pneg %p66
        $region14: #{tpu_custom_call.1} parent=11 // pred_check_branch
          %172 = sbr.rel (%p170) target = $region16
        $region15: #{tpu_custom_call.1} parent=11 // pred_region
          %s174 = ssub.s32 512, 512
          %175 = vsyncadd [#allocation6], %s174
          %s176 = sshll.u32 [#allocation5], 4
          %s177 = int_to_ptr.vmem [resolvable:$true] %s176
          %182 = dma.hbm_to_vmem [thread:$0]  %s1, 512, %s177, [#allocation6], 128, 128, 8
        $region16: #{tpu_custom_call.1} parent=11 // pred_fallthru
          _
        // Predicated region
        $region17: #{tpu_custom_call.1} parent=11 // pred_check
          %p183 = pneg %p87
        $region18: #{tpu_custom_call.1} parent=11 // pred_check_branch
          %185 = sbr.rel (%p183) target = $region20
        $region19: #{tpu_custom_call.1} parent=11 // pred_region
          %s187 = ssub.s32 512, 512
          %188 = vsyncadd [#allocation6], %s187
          %s189 = sshll.u32 [#allocation7], 4
          %s190 = int_to_ptr.vmem [resolvable:$true] %s189
          %195 = dma.hbm_to_vmem [thread:$0]  %s2, 512, %s190, [#allocation6], 128, 128, 8
        $region20: #{tpu_custom_call.1} parent=11 // pred_fallthru
          _
        // Predicated region
        $region21: #{tpu_custom_call.1} parent=11 // pred_check
          %p196 = pneg %p108
        $region22: #{tpu_custom_call.1} parent=11 // pred_check_branch
          %198 = sbr.rel (%p196) target = $region24
        $region23: #{tpu_custom_call.1} parent=11 // pred_region
          _
        $region24: #{tpu_custom_call.1} parent=11 // pred_fallthru
          _
        // Predicated region
        $region25: #{tpu_custom_call.1} parent=11 // pred_check
          %p199 = pneg %p129
        $region26: #{tpu_custom_call.1} parent=11 // pred_check_branch
          %201 = sbr.rel (%p199) target = $region28
        $region27: #{tpu_custom_call.1} parent=11 // pred_region
          %s203 = ssub.s32 512, 512
          %204 = vsyncadd [#allocation9], %s203
          %s205 = sshll.u32 [#allocation8], 4
          %s206 = int_to_ptr.vmem [resolvable:$true] %s205
          %211 = dma.hbm_to_vmem [thread:$0]  %s4, 512, %s206, [#allocation9], 128, 128, 8
        $region28: #{tpu_custom_call.1} parent=11 // pred_fallthru
          _
      $region12: #{tpu_custom_call.1} parent=5 // pred_fallthru
        _
      %p212 = scmp.lt.s32.totalorder %s19, 2
      // Predicated region
      $region29: #{tpu_custom_call.1} parent=5 // pred_check
        %p213 = pneg %p212
      $region30: #{tpu_custom_call.1} parent=5 // pred_check_branch
        %215 = sbr.rel (%p213) target = $region32
      $region31: #{tpu_custom_call.1} parent=5 // pred_region
        // Predicated region
        $region33: #{tpu_custom_call.1} parent=31 // pred_check
          %p216 = pneg %p39
        $region34: #{tpu_custom_call.1} parent=31 // pred_check_branch
          %218 = sbr.rel (%p216) target = $region36
        $region35: #{tpu_custom_call.1} parent=31 // pred_region
          %s219 = sand.u32 %s29, 1
          %s220 = scalar_lea.sflag [#allocation3], %s219
          %s221 = sand.u32 %s29, 1
          %s222 = smul.addr %s221, 8
          %s223 = scalar_lea.vmem [#allocation2], %s222
          %s225 = ssub.s32 128, 128
          %226 = vsyncadd %s220, %s225
          %s227 = smul.addr %s19, 128
          %s228 = scalar_lea.hbm %s0, %s227
          %s230 = sshll.u32 %s223, 4
          %s231 = int_to_ptr.vmem [resolvable:$true] %s230
          %233 = dma.hbm_to_vmem [thread:$0]  %s228, 128, %s231, %s220
        $region36: #{tpu_custom_call.1} parent=31 // pred_fallthru
          _
      $region32: #{tpu_custom_call.1} parent=5 // pred_fallthru
        _
      %p234 = scmp.le.s32.totalorder 1, %s19
      %p235 = scmp.lt.s32.totalorder %s19, 3
      %p236 = pnand %p234, %p235
      %p237 = pneg %p236
      // Predicated region
      $region37: #{tpu_custom_call.1} parent=5 // pred_check
        _
      $region38: #{tpu_custom_call.1} parent=5 // pred_check_branch
        %239 = sbr.rel (%p236) target = $region40
      $region39: #{tpu_custom_call.1} parent=5 // pred_region
        %s240 = ssub.s32 %s19, 1
        %s241 = sand.u32 %s32, 1
        %s242 = scalar_lea.sflag [#allocation3], %s241
        %s243 = sand.u32 %s32, 1
        %s244 = smul.addr %s243, 8
        %s245 = scalar_lea.vmem [#allocation2], %s244
        // Predicated region
        $region41: #{tpu_custom_call.1} parent=39 // pred_check
          %p246 = pneg %p45
        $region42: #{tpu_custom_call.1} parent=39 // pred_check_branch
          %248 = sbr.rel (%p246) target = $region44
        $region43: #{tpu_custom_call.1} parent=39 // pred_region
          %249 = dma.done %s242, 128
        $region44: #{tpu_custom_call.1} parent=39 // pred_fallthru
          _
        // Predicated region
        $region45: #{tpu_custom_call.1} parent=39 // pred_check
          %p250 = pneg %p66
        $region46: #{tpu_custom_call.1} parent=39 // pred_check_branch
          %252 = sbr.rel (%p250) target = $region48
        $region47: #{tpu_custom_call.1} parent=39 // pred_region
          %253 = dma.done [#allocation6], 512
        $region48: #{tpu_custom_call.1} parent=39 // pred_fallthru
          _
        // Predicated region
        $region49: #{tpu_custom_call.1} parent=39 // pred_check
          %p254 = pneg %p87
        $region50: #{tpu_custom_call.1} parent=39 // pred_check_branch
          %256 = sbr.rel (%p254) target = $region52
        $region51: #{tpu_custom_call.1} parent=39 // pred_region
          %257 = dma.done [#allocation6], 512
        $region52: #{tpu_custom_call.1} parent=39 // pred_fallthru
          _
        // Predicated region
        $region53: #{tpu_custom_call.1} parent=39 // pred_check
          %p258 = pneg %p129
        $region54: #{tpu_custom_call.1} parent=39 // pred_check_branch
          %260 = sbr.rel (%p258) target = $region56
        $region55: #{tpu_custom_call.1} parent=39 // pred_region
          %261 = dma.done [#allocation9], 512
        $region56: #{tpu_custom_call.1} parent=39 // pred_fallthru
          _
        %s262 = sand.u32 %s32, 1
        %s263 = scalar_lea.sflag [#allocation3], %s262
        %s264 = sand.u32 %s32, 1
        %s265 = smul.addr %s264, 8
        %s266 = scalar_lea.vmem [#allocation2], %s265
        %p267 = pneg %p45
        %p268 = pneg %p42
        %p269 = pneg %p66
        %p270 = pneg %p63
        %p271 = pneg %p87
        %p272 = pneg %p84
        %p273 = pneg %p108
        %p274 = pneg %p105
        %p275 = pneg %p129
        %p276 = pneg %p126
        %p277 = pneg %p155
        %p278 = pneg %p152
        %s279 = sand.u32 %s142, 1
        %s280 = scalar_lea.sflag [#allocation4], %s279
        %s281 = sand.u32 %s142, 1
        %s282 = smul.addr %s281, 8
        %s283 = scalar_lea.vmem [#allocation10], %s282
        %v284 = vld [vmem:[%s245] sm:$0xff]
        %v285 = vld [vmem:[#allocation5] sm:$0xff]
        %v286 = vld [vmem:[#allocation5 + $0x8] sm:$0xff]
        %v287 = vld [vmem:[#allocation5 + $0x10] sm:$0xff]
        %v288 = vld [vmem:[#allocation5 + $0x18] sm:$0xff]
        %vm289 = vcmask 261120
        %v291 = vsel %vm289, %v284, 0
        %293 = vmatprep.subr.mxu0 0.0
        %294 = vmatpush1.msra.mxu0 %v285
        %295 = vmatprep.subr.mxu0 0.0
        %296 = vmatpush1.msra.mxu0 %v286
        %297 = vmatprep.subr.mxu0 0.0
        %298 = vmatpush1.msra.mxu0 %v287
        %299 = vmatprep.subr.mxu0 0.0
        %300 = vmatpush1.msra.mxu0 %v288
        %301 = vmatprep.subr.mxu0 0.0
        %302 = vmatpush1.msra.mxu0 0.0
        %303 = vmatprep.subr.mxu0 0.0
        %304 = vmatpush1.msra.mxu0 0.0
        %305 = vmatprep.subr.mxu0 0.0
        %306 = vmatpush1.msra.mxu0 0.0
        %307 = vmatprep.subr.mxu0 0.0
        %308 = vmatpush1.msra.mxu0 0.0
        %309 = vmatprep.subr.mxu0 0.0
        %310 = vmatpush1.msra.mxu0 0.0
        %311 = vmatprep.subr.mxu0 0.0
        %312 = vmatpush1.msra.mxu0 0.0
        %313 = vmatprep.subr.mxu0 0.0
        %314 = vmatpush1.msra.mxu0 0.0
        %315 = vmatprep.subr.mxu0 0.0
        %316 = vmatpush1.msra.mxu0 0.0
        %317 = vmatprep.subr.mxu0 0.0
        %318 = vmatpush1.msra.mxu0 0.0
        %319 = vmatprep.subr.mxu0 0.0
        %320 = vmatpush1.msra.mxu0 0.0
        %321 = vmatprep.subr.mxu0 0.0
        %322 = vmatpush1.msra.mxu0 0.0
        %323 = vmatprep.subr.mxu0 0.0
        %324 = vmatpush1.msra.mxu0 0.0
        %325 = vmatprep.subr.mxu0 0.0
        %326 = vmatpush1.msra.mxu0 0.0
        %327 = vmatprep.subr.mxu0 0.0
        %328 = vmatpush1.msra.mxu0 0.0
        %329 = vmatprep.subr.mxu0 0.0
        %330 = vmatpush1.msra.mxu0 0.0
        %331 = vmatprep.subr.mxu0 0.0
        %332 = vmatpush1.msra.mxu0 0.0
        %333 = vmatprep.subr.mxu0 0.0
        %334 = vmatpush1.msra.mxu0 0.0
        %335 = vmatprep.subr.mxu0 0.0
        %336 = vmatpush1.msra.mxu0 0.0
        %337 = vmatprep.subr.mxu0 0.0
        %338 = vmatpush1.msra.mxu0 0.0
        %339 = vmatprep.subr.mxu0 0.0
        %340 = vmatpush1.msra.mxu0 0.0
        %341 = vmatprep.subr.mxu0 0.0
        %342 = vmatpush1.msra.mxu0 0.0
        %343 = vmatprep.subr.mxu0 0.0
        %344 = vmatpush1.msra.mxu0 0.0
        %345 = vmatprep.subr.mxu0 0.0
        %346 = vmatpush1.msra.mxu0 0.0
        %347 = vmatprep.subr.mxu0 0.0
        %348 = vmatpush1.msra.mxu0 0.0
        %349 = vmatprep.subr.mxu0 0.0
        %350 = vmatpush1.msra.mxu0 0.0
        %351 = vmatprep.subr.mxu0 0.0
        %352 = vmatpush1.msra.mxu0 0.0
        %353 = vmatprep.subr.mxu0 0.0
        %354 = vmatpush1.msra.mxu0 0.0
        %355 = vmatprep.subr.mxu0 0.0
        %356 = vmatpush1.msra.mxu0 0.0
        %357 = vmatprep.mubr.f32.mxu0 0.0
        %358 = vmatmul.mubr.f32.gmra.mrb[0].mxu0 %v291
        %v359 = vpop.f32.mrb[0].mxu0
        %v360 = vadd.f32 0.0, %v359
        %v361 = vpop.f32.mrb[0].mxu0
        %362 = vdwg.mxu0
        %v363 = vld [vmem:[#allocation8] sm:$0xff]
        %v364 = vld [vmem:[#allocation8 + $0x8] sm:$0xff]
        %v365 = vld [vmem:[#allocation8 + $0x10] sm:$0xff]
        %v366 = vld [vmem:[#allocation8 + $0x18] sm:$0xff]
        %367 = vxpose.xlu0.b32.start [1/16] %v360, 128
        %368 = vxpose.xlu0.b32.cont [2/16] 0.0, 128
        %369 = vxpose.xlu0.b32.cont [3/16] 0.0, 128
        %370 = vxpose.xlu0.b32.cont [4/16] 0.0, 128
        %371 = vxpose.xlu0.b32.cont [5/16] 0.0, 128
        %372 = vxpose.xlu0.b32.cont [6/16] 0.0, 128
        %373 = vxpose.xlu0.b32.cont [7/16] 0.0, 128
        %374 = vxpose.xlu0.b32.cont [8/16] 0.0, 128
        %375 = vxpose.xlu0.b32.cont [9/16] 0.0, 128
        %376 = vxpose.xlu0.b32.cont [10/16] 0.0, 128
        %377 = vxpose.xlu0.b32.cont [11/16] 0.0, 128
        %378 = vxpose.xlu0.b32.cont [12/16] 0.0, 128
        %379 = vxpose.xlu0.b32.cont [13/16] 0.0, 128
        %380 = vxpose.xlu0.b32.cont [14/16] 0.0, 128
        %381 = vxpose.xlu0.b32.cont [15/16] 0.0, 128
        %382 = vxpose.xlu0.b32.end [16/16] 0.0, 128
        %v383 = vpop.trf.xlu0
        %v384 = vpop.trf.xlu0
        %v385 = vpop.trf.xlu0
        %v386 = vpop.trf.xlu0
        %v387 = vpop.trf.xlu0
        %v388 = vpop.trf.xlu0
        %v389 = vpop.trf.xlu0
        %v390 = vpop.trf.xlu0
        %v391 = vpop.trf.xlu0
        %v392 = vpop.trf.xlu0
        %v393 = vpop.trf.xlu0
        %v394 = vpop.trf.xlu0
        %v395 = vpop.trf.xlu0
        %v396 = vpop.trf.xlu0
        %v397 = vpop.trf.xlu0
        %v398 = vpop.trf.xlu0
        %400 = vrot.lane.b32.xlu0 %v360, 96
        %v401 = vpop.permute.xlu0 %400
        %vm403 = vcmask 64512
        %v405 = vsel %vm403, %v383, 0
        %v408 = vsel %vm403, %v384, 0
        %v411 = vsel %vm403, %v385, 0
        %v414 = vsel %vm403, %v386, 0
        %416 = vmatprep.subr.mxu0 0.0
        %417 = vmatpush1.msra.mxu0 %v401
        %418 = vmatprep.subr.mxu0 0.0
        %419 = vmatpush1.msra.mxu0 0.0
        %420 = vmatprep.subr.mxu0 0.0
        %421 = vmatpush1.msra.mxu0 0.0
        %422 = vmatprep.subr.mxu0 0.0
        %423 = vmatpush1.msra.mxu0 0.0
        %424 = vmatprep.subr.mxu0 0.0
        %425 = vmatpush1.msra.mxu0 0.0
        %426 = vmatprep.subr.mxu0 0.0
        %427 = vmatpush1.msra.mxu0 0.0
        %428 = vmatprep.subr.mxu0 0.0
        %429 = vmatpush1.msra.mxu0 0.0
        %430 = vmatprep.subr.mxu0 0.0
        %431 = vmatpush1.msra.mxu0 0.0
        %432 = vmatprep.subr.mxu0 0.0
        %433 = vmatpush1.msra.mxu0 0.0
        %434 = vmatprep.subr.mxu0 0.0
        %435 = vmatpush1.msra.mxu0 0.0
        %436 = vmatprep.subr.mxu0 0.0
        %437 = vmatpush1.msra.mxu0 0.0
        %438 = vmatprep.subr.mxu0 0.0
        %439 = vmatpush1.msra.mxu0 0.0
        %440 = vmatprep.subr.mxu0 0.0
        %441 = vmatpush1.msra.mxu0 0.0
        %442 = vmatprep.subr.mxu0 0.0
        %443 = vmatpush1.msra.mxu0 0.0
        %444 = vmatprep.subr.mxu0 0.0
        %445 = vmatpush1.msra.mxu0 0.0
        %446 = vmatprep.subr.mxu0 0.0
        %447 = vmatpush1.msra.mxu0 0.0
        %448 = vmatprep.subr.mxu0 0.0
        %449 = vmatpush1.msra.mxu0 0.0
        %450 = vmatprep.subr.mxu0 0.0
        %451 = vmatpush1.msra.mxu0 0.0
        %452 = vmatprep.subr.mxu0 0.0
        %453 = vmatpush1.msra.mxu0 0.0
        %454 = vmatprep.subr.mxu0 0.0
        %455 = vmatpush1.msra.mxu0 0.0
        %456 = vmatprep.subr.mxu0 0.0
        %457 = vmatpush1.msra.mxu0 0.0
        %458 = vmatprep.subr.mxu0 0.0
        %459 = vmatpush1.msra.mxu0 0.0
        %460 = vmatprep.subr.mxu0 0.0
        %461 = vmatpush1.msra.mxu0 0.0
        %462 = vmatprep.subr.mxu0 0.0
        %463 = vmatpush1.msra.mxu0 0.0
        %464 = vmatprep.subr.mxu0 0.0
        %465 = vmatpush1.msra.mxu0 0.0
        %466 = vmatprep.subr.mxu0 0.0
        %467 = vmatpush1.msra.mxu0 0.0
        %468 = vmatprep.subr.mxu0 0.0
        %469 = vmatpush1.msra.mxu0 0.0
        %470 = vmatprep.subr.mxu0 0.0
        %471 = vmatpush1.msra.mxu0 0.0
        %472 = vmatprep.subr.mxu0 0.0
        %473 = vmatpush1.msra.mxu0 0.0
        %474 = vmatprep.subr.mxu0 0.0
        %475 = vmatpush1.msra.mxu0 0.0
        %476 = vmatprep.subr.mxu0 0.0
        %477 = vmatpush1.msra.mxu0 0.0
        %478 = vmatprep.subr.mxu0 0.0
        %479 = vmatpush1.msra.mxu0 0.0
        %480 = vmatprep.mubr.f32.mxu0 0.0
        %481 = vmatmul.mubr.f32.gmra.mrb[0].mxu0 %v405
        %v482 = vpop.f32.mrb[0].mxu0
        %v483 = vadd.f32 %v363, %v482
        %v484 = vpop.f32.mrb[0].mxu0
        %485 = vmatprep.mubr.f32.mxu0 0.0
        %486 = vmatmul.mubr.f32.gmra.mrb[0].mxu0 %v408
        %v487 = vpop.f32.mrb[0].mxu0
        %v488 = vadd.f32 %v364, %v487
        %v489 = vpop.f32.mrb[0].mxu0
        %490 = vmatprep.mubr.f32.mxu0 0.0
        %491 = vmatmul.mubr.f32.gmra.mrb[0].mxu0 %v411
        %v492 = vpop.f32.mrb[0].mxu0
        %v493 = vadd.f32 %v365, %v492
        %v494 = vpop.f32.mrb[0].mxu0
        %495 = vmatprep.mubr.f32.mxu0 0.0
        %496 = vmatmul.mubr.f32.gmra.mrb[0].mxu0 %v414
        %v497 = vpop.f32.mrb[0].mxu0
        %v498 = vadd.f32 %v366, %v497
        %v499 = vpop.f32.mrb[0].mxu0
        %500 = vdwg.mxu0
        %v501 = vsel %vm289, %v483, -inf
        %502 = vmax.xlane.f32.xlu0 %v501
        %v503 = vpop.xlane.xlu0 %502
        %v504 = vsel %vm289, %v488, -inf
        %505 = vmax.xlane.f32.xlu0 %v504
        %v506 = vpop.xlane.xlu0 %505
        %v507 = vsel %vm289, %v493, -inf
        %508 = vmax.xlane.f32.xlu0 %v507
        %v509 = vpop.xlane.xlu0 %508
        %v510 = vsel %vm289, %v498, -inf
        %511 = vmax.xlane.f32.xlu0 %v510
        %v512 = vpop.xlane.xlu0 %511
        %v513 = vsub.f32 %v483, %v503
        %v514 = vsub.f32 %v488, %v506
        %v515 = vsub.f32 %v493, %v509
        %v516 = vsub.f32 %v498, %v512
        %v517 = vmul.f32 %v513, 1.442695
        %v518 = vpow.pop %v517
        %v519 = vmul.f32 %v514, 1.442695
        %v520 = vpow.pop %v519
        %v521 = vmul.f32 %v515, 1.442695
        %v522 = vpow.pop %v521
        %v523 = vmul.f32 %v516, 1.442695
        %v524 = vpow.pop %v523
        %v525 = vsel %vm289, %v518, 0.0
        %526 = vadd.xlane.f32.xlu0 %v525
        %v527 = vpop.xlane.xlu0 %526
        %v528 = vsel %vm289, %v520, 0.0
        %529 = vadd.xlane.f32.xlu0 %v528
        %v530 = vpop.xlane.xlu0 %529
        %v531 = vsel %vm289, %v522, 0.0
        %532 = vadd.xlane.f32.xlu0 %v531
        %v533 = vpop.xlane.xlu0 %532
        %v534 = vsel %vm289, %v524, 0.0
        %535 = vadd.xlane.f32.xlu0 %v534
        %v536 = vpop.xlane.xlu0 %535
        %v537 = vrcp.pop %v527
        %v538 = vrcp.pop %v530
        %v539 = vrcp.pop %v533
        %v540 = vrcp.pop %v536
        %v541 = vmul.f32 %v518, %v537
        %v542 = vmul.f32 %v520, %v538
        %v543 = vmul.f32 %v522, %v539
        %v544 = vmul.f32 %v524, %v540
        %545 = vrot.lane.b32.xlu0 %v360, 64
        %v546 = vpop.permute.xlu0 %545
        %v547 = vsel %vm289, %v546, 0
        %v550 = vsel %vm289, %v541, 0
        %v553 = vsel %vm289, %v542, 0
        %v556 = vsel %vm289, %v543, 0
        %v559 = vsel %vm289, %v544, 0
        %561 = vmatprep.subr.mxu0 0.0
        %562 = vmatpush1.xpose.msra.mxu0 %v550
        %563 = vmatprep.subr.mxu0 0.0
        %564 = vmatpush1.xpose.msra.mxu0 %v553
        %565 = vmatprep.subr.mxu0 0.0
        %566 = vmatpush1.xpose.msra.mxu0 %v556
        %567 = vmatprep.subr.mxu0 0.0
        %568 = vmatpush1.xpose.msra.mxu0 %v559
        %569 = vmatprep.subr.mxu0 0.0
        %570 = vmatpush1.xpose.msra.mxu0 0.0
        %571 = vmatprep.subr.mxu0 0.0
        %572 = vmatpush1.xpose.msra.mxu0 0.0
        %573 = vmatprep.subr.mxu0 0.0
        %574 = vmatpush1.xpose.msra.mxu0 0.0
        %575 = vmatprep.subr.mxu0 0.0
        %576 = vmatpush1.xpose.msra.mxu0 0.0
        %577 = vmatprep.subr.mxu0 0.0
        %578 = vmatpush1.xpose.msra.mxu0 0.0
        %579 = vmatprep.subr.mxu0 0.0
        %580 = vmatpush1.xpose.msra.mxu0 0.0
        %581 = vmatprep.subr.mxu0 0.0
        %582 = vmatpush1.xpose.msra.mxu0 0.0
        %583 = vmatprep.subr.mxu0 0.0
        %584 = vmatpush1.xpose.msra.mxu0 0.0
        %585 = vmatprep.subr.mxu0 0.0
        %586 = vmatpush1.xpose.msra.mxu0 0.0
        %587 = vmatprep.subr.mxu0 0.0
        %588 = vmatpush1.xpose.msra.mxu0 0.0
        %589 = vmatprep.subr.mxu0 0.0
        %590 = vmatpush1.xpose.msra.mxu0 0.0
        %591 = vmatprep.subr.mxu0 0.0
        %592 = vmatpush1.xpose.msra.mxu0 0.0
        %593 = vmatprep.subr.mxu0 0.0
        %594 = vmatpush1.xpose.msra.mxu0 0.0
        %595 = vmatprep.subr.mxu0 0.0
        %596 = vmatpush1.xpose.msra.mxu0 0.0
        %597 = vmatprep.subr.mxu0 0.0
        %598 = vmatpush1.xpose.msra.mxu0 0.0
        %599 = vmatprep.subr.mxu0 0.0
        %600 = vmatpush1.xpose.msra.mxu0 0.0
        %601 = vmatprep.subr.mxu0 0.0
        %602 = vmatpush1.xpose.msra.mxu0 0.0
        %603 = vmatprep.subr.mxu0 0.0
        %604 = vmatpush1.xpose.msra.mxu0 0.0
        %605 = vmatprep.subr.mxu0 0.0
        %606 = vmatpush1.xpose.msra.mxu0 0.0
        %607 = vmatprep.subr.mxu0 0.0
        %608 = vmatpush1.xpose.msra.mxu0 0.0
        %609 = vmatprep.subr.mxu0 0.0
        %610 = vmatpush1.xpose.msra.mxu0 0.0
        %611 = vmatprep.subr.mxu0 0.0
        %612 = vmatpush1.xpose.msra.mxu0 0.0
        %613 = vmatprep.subr.mxu0 0.0
        %614 = vmatpush1.xpose.msra.mxu0 0.0
        %615 = vmatprep.subr.mxu0 0.0
        %616 = vmatpush1.xpose.msra.mxu0 0.0
        %617 = vmatprep.subr.mxu0 0.0
        %618 = vmatpush1.xpose.msra.mxu0 0.0
        %619 = vmatprep.subr.mxu0 0.0
        %620 = vmatpush1.xpose.msra.mxu0 0.0
        %621 = vmatprep.subr.mxu0 0.0
        %622 = vmatpush1.xpose.msra.mxu0 0.0
        %623 = vmatprep.subr.mxu0 0.0
        %624 = vmatpush1.xpose.msra.mxu0 0.0
        %625 = vmatprep.mubr.f32.mxu0 0.0
        %626 = vmatmul.mubr.f32.gmra.mrb[0].mxu0 %v547
        %v627 = vpop.f32.mrb[0].mxu0
        %v628 = vadd.f32 0.0, %v627
        %v629 = vpop.f32.mrb[0].mxu0
        %630 = vdwg.mxu0
        %v631 = vld [vmem:[#allocation7] sm:$0xff]
        %v632 = vld [vmem:[#allocation7 + $0x8] sm:$0xff]
        %v633 = vld [vmem:[#allocation7 + $0x10] sm:$0xff]
        %v634 = vld [vmem:[#allocation7 + $0x18] sm:$0xff]
        %v635 = vld [vmem:[%s3] sm:$0x1]
        %v637 = vlaneseq
        %v638 = vshrl.u32 %v637, 7
        %v639 = vsub.s32 0, %v638
        %v640 = vrot.slane %v635, %v639
        %v643 = vsel %vm289, %v628, 0
        %645 = vmatprep.subr.mxu0 0.0
        %646 = vmatpush1.msra.mxu0 %v631
        %647 = vmatprep.subr.mxu0 0.0
        %648 = vmatpush1.msra.mxu0 %v632
        %649 = vmatprep.subr.mxu0 0.0
        %650 = vmatpush1.msra.mxu0 %v633
        %651 = vmatprep.subr.mxu0 0.0
        %652 = vmatpush1.msra.mxu0 %v634
        %653 = vmatprep.subr.mxu0 0.0
        %654 = vmatpush1.msra.mxu0 0.0
        %655 = vmatprep.subr.mxu0 0.0
        %656 = vmatpush1.msra.mxu0 0.0
        %657 = vmatprep.subr.mxu0 0.0
        %658 = vmatpush1.msra.mxu0 0.0
        %659 = vmatprep.subr.mxu0 0.0
        %660 = vmatpush1.msra.mxu0 0.0
        %661 = vmatprep.subr.mxu0 0.0
        %662 = vmatpush1.msra.mxu0 0.0
        %663 = vmatprep.subr.mxu0 0.0
        %664 = vmatpush1.msra.mxu0 0.0
        %665 = vmatprep.subr.mxu0 0.0
        %666 = vmatpush1.msra.mxu0 0.0
        %667 = vmatprep.subr.mxu0 0.0
        %668 = vmatpush1.msra.mxu0 0.0
        %669 = vmatprep.subr.mxu0 0.0
        %670 = vmatpush1.msra.mxu0 0.0
        %671 = vmatprep.subr.mxu0 0.0
        %672 = vmatpush1.msra.mxu0 0.0
        %673 = vmatprep.subr.mxu0 0.0
        %674 = vmatpush1.msra.mxu0 0.0
        %675 = vmatprep.subr.mxu0 0.0
        %676 = vmatpush1.msra.mxu0 0.0
        %677 = vmatprep.subr.mxu0 0.0
        %678 = vmatpush1.msra.mxu0 0.0
        %679 = vmatprep.subr.mxu0 0.0
        %680 = vmatpush1.msra.mxu0 0.0
        %681 = vmatprep.subr.mxu0 0.0
        %682 = vmatpush1.msra.mxu0 0.0
        %683 = vmatprep.subr.mxu0 0.0
        %684 = vmatpush1.msra.mxu0 0.0
        %685 = vmatprep.subr.mxu0 0.0
        %686 = vmatpush1.msra.mxu0 0.0
        %687 = vmatprep.subr.mxu0 0.0
        %688 = vmatpush1.msra.mxu0 0.0
        %689 = vmatprep.subr.mxu0 0.0
        %690 = vmatpush1.msra.mxu0 0.0
        %691 = vmatprep.subr.mxu0 0.0
        %692 = vmatpush1.msra.mxu0 0.0
        %693 = vmatprep.subr.mxu0 0.0
        %694 = vmatpush1.msra.mxu0 0.0
        %695 = vmatprep.subr.mxu0 0.0
        %696 = vmatpush1.msra.mxu0 0.0
        %697 = vmatprep.subr.mxu0 0.0
        %698 = vmatpush1.msra.mxu0 0.0
        %699 = vmatprep.subr.mxu0 0.0
        %700 = vmatpush1.msra.mxu0 0.0
        %701 = vmatprep.subr.mxu0 0.0
        %702 = vmatpush1.msra.mxu0 0.0
        %703 = vmatprep.subr.mxu0 0.0
        %704 = vmatpush1.msra.mxu0 0.0
        %705 = vmatprep.subr.mxu0 0.0
        %706 = vmatpush1.msra.mxu0 0.0
        %707 = vmatprep.subr.mxu0 0.0
        %708 = vmatpush1.msra.mxu0 0.0
        %709 = vmatprep.mubr.f32.mxu0 0.0
        %710 = vmatmul.mubr.f32.gmra.mrb[0].mxu0 %v643
        %v711 = vpop.f32.mrb[0].mxu0
        %v712 = vadd.f32 %v640, %v711
        %v713 = vpop.f32.mrb[0].mxu0
        %714 = vdwg.mxu0
        %715 = vst.msk [vmem:[%s283] sm:$0xff] %vm289, %v712
        %s716 = sand.u32 %s142, 1
        %s717 = scalar_lea.sflag [#allocation4], %s716
        %s718 = sand.u32 %s142, 1
        %s719 = smul.addr %s718, 8
        %s720 = scalar_lea.vmem [#allocation10], %s719
        // Predicated region
        $region57: #{tpu_custom_call.1} parent=39 // pred_check
          %p721 = pneg %p152
        $region58: #{tpu_custom_call.1} parent=39 // pred_check_branch
          %723 = sbr.rel (%p721) target = $region60
        $region59: #{tpu_custom_call.1} parent=39 // pred_region
          %s725 = ssub.s32 128, 128
          %726 = vsyncadd %s717, %s725
          %s727 = smul.addr %s24, 128
          %s728 = scalar_lea.hbm %s5, %s727
          %s730 = sshll.u32 %s720, 4
          %s731 = int_to_ptr.vmem [resolvable:$true] %s730
          %733 = dma.vmem_to_hbm [thread:$0]  %s731, 128, %s728, %s717
        $region60: #{tpu_custom_call.1} parent=39 // pred_fallthru
          _
      $region40: #{tpu_custom_call.1} parent=5 // pred_fallthru
        _
      %p734 = scmp.le.s32.totalorder 2, %s19
      // Predicated region
      $region61: #{tpu_custom_call.1} parent=5 // pred_check
        %p735 = pneg %p734
      $region62: #{tpu_custom_call.1} parent=5 // pred_check_branch
        %737 = sbr.rel (%p735) target = $region64
      $region63: #{tpu_custom_call.1} parent=5 // pred_region
        %s738 = ssub.s32 %s19, 2
        // Predicated region
        $region65: #{tpu_custom_call.1} parent=63 // pred_check
          %p739 = pneg %p158
        $region66: #{tpu_custom_call.1} parent=63 // pred_check_branch
          %741 = sbr.rel (%p739) target = $region68
        $region67: #{tpu_custom_call.1} parent=63 // pred_region
          %s742 = sand.u32 %s143, 1
          %s743 = scalar_lea.sflag [#allocation4], %s742
          %s744 = sand.u32 %s143, 1
          %s745 = smul.addr %s744, 8
          %s746 = scalar_lea.vmem [#allocation10], %s745
          %747 = dma.done %s743, 128
        $region68: #{tpu_custom_call.1} parent=63 // pred_fallthru
          _
      $region64: #{tpu_custom_call.1} parent=5 // pred_fallthru
        _
    $region6: #{tpu_custom_call.1} parent=1 // loop_footer
      %s23 = sadd.s32 1, %s19
    $region7: #{tpu_custom_call.1} parent=1 // loop_footer_branch
      %18 = sbr.rel target = $region3
    $region8: #{tpu_custom_call.1} parent=1 // loop_exit
      _
    %748 = vsyncpa [#allocation3], 1
    %s749 = scalar_lea.sflag [#allocation3], 1
    %750 = vsyncpa %s749, 1
    %751 = vsyncpa [#allocation6], 1
    %752 = vsyncpa [#allocation9], 1
    %753 = vsyncpa [#allocation4], 1
    %s754 = scalar_lea.sflag [#allocation4], 1
    %755 = vsyncpa %s754, 1

</llo_original>
